<compile_context>
chip_gen: v7x
topology: tpu7x:2x2x1
jax: 0.10.0
libtpu: 0.0.40
codegen_flags: <defaults>
</compile_context>

<pallas_src>
import functools
import math

import jax
import jax.numpy as jnp
from jax.experimental import pallas as pl
from jax.experimental.pallas import tpu as pltpu

_SQRT_2_OVER_PI = math.sqrt(2.0 / math.pi)
_MIB = 1024 * 1024


def _device_kind():
    try:
        return jax.devices()[0].device_kind.lower()
    except Exception:
        return ""


def _default_gelu_dtype():
    # bf16 VPU/EUP exists on v6e/v7x; keep f32 math on v5e and older.
    kind = _device_kind()
    if ("v6" in kind) or ("v7" in kind) or ("7x" in kind):
        return jnp.bfloat16
    return jnp.float32


def _wanted_row_tiles():
    # v7x has 2 TensorCores per chip; keep >= 2 token tiles so the "parallel"
    # grid axis can be sharded across both.
    kind = _device_kind()
    return 2 if (("v7" in kind) or ("7x" in kind)) else 1


def _round_up(x, m):
    return ((x + m - 1) // m) * m


def _ffn_kernel(x_ref, w1_ref, b1_ref, w2_ref, b2_ref, o_ref, acc_ref, *,
                mm_dtype, gelu_dtype):
    """One (token-tile, hidden-chunk) step of the fused FFN.

    x_ref  : (tm, E)   token tile (original dtype; cast to mm_dtype in-kernel)
    w1_ref : (E, th)   chunk of first Linear weight
    b1_ref : (1, th)   chunk of first Linear bias (f32)
    w2_ref : (th, E)   chunk of second Linear weight
    b2_ref : (1, E)    second Linear bias (f32)
    o_ref  : (tm, E)   output tile (written on last hidden chunk)
    acc_ref: (tm, E)   f32 accumulator scratch
    """
    hb = pl.program_id(1)

    @pl.when(hb == 0)
    def _init():
        acc_ref[...] = jnp.zeros_like(acc_ref)

    x = x_ref[...]
    if x.dtype != mm_dtype:
        x = x.astype(mm_dtype)          # in-kernel VPU cast (no extra HBM pass)
    w1 = w1_ref[...]
    if w1.dtype != mm_dtype:
        w1 = w1.astype(mm_dtype)

    # Linear 1 chunk on the MXU (f32 accumulation) + bias in f32.
    h = jnp.dot(x, w1, preferred_element_type=jnp.float32)
    h = h + b1_ref[...]

    # GELU with tanh approximation (matches torch.nn.GELU(approximate='tanh')).
    # Computed in gelu_dtype (bf16 on v6e/v7x, f32 on v5e); factored polynomial.
    hg = h.astype(gelu_dtype)
    inner = _SQRT_2_OVER_PI * hg * (1.0 + 0.044715 * (hg * hg))
    g = 0.5 * hg * (1.0 + jnp.tanh(inner))

    w2 = w2_ref[...]
    if w2.dtype != mm_dtype:
        w2 = w2.astype(mm_dtype)

    # Linear 2 chunk, accumulated over hidden chunks in f32 scratch.
    acc_ref[...] += jnp.dot(g.astype(mm_dtype), w2,
                            preferred_element_type=jnp.float32)

    @pl.when(hb == pl.num_programs(1) - 1)
    def _emit():
        o_ref[...] = (acc_ref[...] + b2_ref[...]).astype(o_ref.dtype)


def _choose_tiles(M, E, H, x_bytes, w_bytes, out_bytes, vmem_cap, min_row_tiles):
    """Pick (token tile tm, hidden chunk th, padded token count) under a VMEM budget."""
    M8 = _round_up(max(M, 1), 8)

    # Hidden-chunk candidates.  Fast path: keep both weight matrices resident
    # (one DMA per call) when their double-buffered footprint is small.
    th_cands = []
    full_w_buf = 2 * 2 * E * H * w_bytes   # double-buffered W1 + W2 at th = H
    if full_w_buf <= vmem_cap // 2:
        th_cands.append(H)
    th_cands += sorted((d for d in range(128, min(H, 2048) + 1, 128) if H % d == 0),
                       reverse=True)
    if not th_cands:
        # Guard: H with no 128-multiple divisor -> full-H chunk, budget-checked below.
        th_cands = [H]

    tm_cands = [t for t in (1024, 896, 768, 640, 512, 448, 384, 320, 256,
                            192, 128, 96, 64, 48, 32, 24, 16, 8) if t <= M8]
    if not tm_cands:
        tm_cands = [M8]

    def vmem_use(tm, th):
        return (2 * tm * E * x_bytes            # double-buffered activation tile
                + 2 * tm * E * out_bytes        # double-buffered output tile
                + tm * E * 4                    # f32 accumulator scratch
                + 2 * 2 * E * th * w_bytes      # double-buffered W1 + W2 chunks
                + 2 * 8 * (th + E) * 4)         # sublane-padded bias tiles

    need_rows_opts = (min_row_tiles,) if min_row_tiles <= 1 else (min_row_tiles, 1)
    for need_rows in need_rows_opts:
        for waste_cap in (0.05, 0.13, 0.30, 1.0):
            for tm in tm_cands:                 # biggest tm first -> best AI
                M_pad = _round_up(M, tm)
                if (M_pad - M) / M_pad > waste_cap:
                    continue
                if M_pad // tm < need_rows:
                    continue
                for th in th_cands:             # biggest th first -> fewest acc passes
                    if vmem_use(tm, th) <= vmem_cap:
                        return tm, th, M_pad
    raise ValueError(
        "feed_forward: no (tm, th) tiling fits the VMEM budget "
        f"(M={M}, E={E}, H={H}, cap={vmem_cap} bytes); raise vmem_cap_bytes.")


def feed_forward(x, w1, b1, w2, b2, *, mm_dtype=jnp.bfloat16, gelu_dtype=None,
                 vmem_cap_bytes=48 * _MIB):
    """Fused Linear -> GELU(tanh) -> Linear.

    x : (B, S, E); w1: (E, 4E); b1: (4E,); w2: (4E, E); b2: (E,).
    Pass weights pre-cast to bf16 (done once at model init) to avoid a per-call
    HBM cast pass; the kernel casts operands only if needed.
    Returns (B, S, E) in x's dtype.
    """
    B, S, E = x.shape
    H = w1.shape[1]
    assert w1.shape == (E, H) and w2.shape == (H, E)
    assert b1.shape == (H,) and b2.shape == (E,)
    M = B * S

    out_dtype = x.dtype
    if gelu_dtype is None:
        gelu_dtype = _default_gelu_dtype()

    x_bytes = jnp.dtype(x.dtype).itemsize
    w_bytes = max(jnp.dtype(w1.dtype).itemsize, jnp.dtype(w2.dtype).itemsize)
    out_bytes = jnp.dtype(out_dtype).itemsize

    tm, th, M_pad = _choose_tiles(M, E, H, x_bytes, w_bytes, out_bytes,
                                  int(vmem_cap_bytes), _wanted_row_tiles())

    x2d = x.reshape(M, E)                       # no wrapper-side dtype cast
    if M_pad != M:
        x2d = jnp.pad(x2d, ((0, M_pad - M), (0, 0)))

    b1_2d = b1.reshape(1, H).astype(jnp.float32)
    b2_2d = b2.reshape(1, E).astype(jnp.float32)

    grid = (M_pad // tm, H // th)
    n_row_tiles, n_h_tiles = grid

    w_traffic = (w1.size * jnp.dtype(w1.dtype).itemsize
                 + w2.size * jnp.dtype(w2.dtype).itemsize)
    weight_refetch = 1 if n_h_tiles == 1 else n_row_tiles  # resident-weight fast path
    cost = pl.CostEstimate(
        flops=4 * M_pad * E * H,                 # two matmuls
        transcendentals=M_pad * H,               # tanh
        bytes_accessed=int(M_pad * E * x_bytes
                           + weight_refetch * w_traffic
                           + M_pad * E * out_bytes
                           + (H + E) * 4),
    )

    kernel = functools.partial(_ffn_kernel, mm_dtype=mm_dtype,
                               gelu_dtype=gelu_dtype)

    out2d = pl.pallas_call(
        kernel,
        out_shape=jax.ShapeDtypeStruct((M_pad, E), out_dtype),
        grid=grid,
        in_specs=[
            pl.BlockSpec((tm, E), lambda i, h: (i, 0)),   # x tile
            pl.BlockSpec((E, th), lambda i, h: (0, h)),   # W1 hidden chunk
            pl.BlockSpec((1, th), lambda i, h: (0, h)),   # b1 hidden chunk
            pl.BlockSpec((th, E), lambda i, h: (h, 0)),   # W2 hidden chunk
            pl.BlockSpec((1, E), lambda i, h: (0, 0)),    # b2
        ],
        out_specs=pl.BlockSpec((tm, E), lambda i, h: (i, 0)),
        scratch_shapes=[pltpu.VMEM((tm, E), jnp.float32)],
        compiler_params=pltpu.CompilerParams(
            dimension_semantics=("parallel", "arbitrary"),
            vmem_limit_bytes=int(vmem_cap_bytes),
        ),
        cost_estimate=cost,
    )(x2d, w1, b1_2d, w2, b2_2d)

    if M_pad != M:
        out2d = out2d[:M]
    return out2d.reshape(B, S, E)


if __name__ == "__main__":
    # Small, lane-dense config consistent with the module: emb_dim=128 -> hidden=512.
    batch, seq, emb_dim = 2, 64, 128
    hidden = 4 * emb_dim

    key = jax.random.PRNGKey(0)
    k_x, k_w1, k_b1, k_w2, k_b2 = jax.random.split(key, 5)

    x = jax.random.normal(k_x, (batch, seq, emb_dim), dtype=jnp.float32)

    # Deterministic parameter init (PyTorch Linear-style uniform bounds).
    bound1 = 1.0 / math.sqrt(emb_dim)
    bound2 = 1.0 / math.sqrt(hidden)
    w1 = jax.random.uniform(k_w1, (emb_dim, hidden), jnp.float32, -bound1, bound1)
    b1 = jax.random.uniform(k_b1, (hidden,), jnp.float32, -bound1, bound1)
    w2 = jax.random.uniform(k_w2, (hidden, emb_dim), jnp.float32, -bound2, bound2)
    b2 = jax.random.uniform(k_b2, (emb_dim,), jnp.float32, -bound2, bound2)

    # Cast weights to bf16 ONCE ("model init" time) per perf guidance; the
    # wrapper/kernel will not re-cast them per call.
    w1b = jax.block_until_ready(w1.astype(jnp.bfloat16))
    w2b = jax.block_until_ready(w2.astype(jnp.bfloat16))

    out = jax.block_until_ready(feed_forward(x, w1b, b1, w2b, b2))

    c = _SQRT_2_OVER_PI
    x2d = x.reshape(-1, emb_dim)

    # Reference 1: pure f32 math (loose tolerance — kernel uses bf16 MXU operands).
    h_f32 = x2d @ w1 + b1
    g_f32 = 0.5 * h_f32 * (1.0 + jnp.tanh(c * (h_f32 + 0.044715 * h_f32 ** 3)))
    y_f32 = (g_f32 @ w2 + b2).reshape(batch, seq, emb_dim)
    assert jnp.allclose(out, y_f32, atol=5e-2, rtol=5e-2), "mismatch vs f32 reference"

    # Reference 2: same operand rounding / GELU dtype as the kernel (tighter).
    gelu_dt = _default_gelu_dtype()
    h_bf = jnp.dot(x2d.astype(jnp.bfloat16), w1b,
                   preferred_element_type=jnp.float32) + b1
    hg = h_bf.astype(gelu_dt)
    g_bf = (0.5 * hg * (1.0 + jnp.tanh(c * hg * (1.0 + 0.044715 * (hg * hg)))))
    g_bf = g_bf.astype(jnp.float32)
    y_bf = (jnp.dot(g_bf.astype(jnp.bfloat16), w2b,
                    preferred_element_type=jnp.float32) + b2)
    y_bf = y_bf.reshape(batch, seq, emb_dim)
    assert jnp.allclose(out, y_bf, atol=1e-2, rtol=1e-2), "mismatch vs matched reference"

    print("KERNEL_OK")
</pallas_src>

<mosaic_0001>
module attributes {stable_mosaic.version = 11 : i64} {
  func.func @_ffn_kernel(%arg0: i32, %arg1: i32, %arg2: memref<128x128xf32, #tpu.memory_space<vmem>>, %arg3: memref<128x512xbf16, #tpu.memory_space<vmem>>, %arg4: memref<1x512xf32, #tpu.memory_space<vmem>>, %arg5: memref<512x128xbf16, #tpu.memory_space<vmem>>, %arg6: memref<1x128xf32, #tpu.memory_space<vmem>>, %arg7: memref<128x128xf32, #tpu.memory_space<vmem>>, %arg8: memref<128x128xf32, #tpu.memory_space<vmem>>) attributes {dimension_semantics = [#tpu.dimension_semantics<parallel>, #tpu.dimension_semantics<arbitrary>], iteration_bounds = array<i64: 1, 1>, scalar_prefetch = 0 : i64, scratch_operands = 1 : i64, tpu.core_type = #tpu.core_type<tc>, window_params = [{transform_indices = @transform_0, window_bounds = array<i64: 128, 128>}, {transform_indices = @transform_1, window_bounds = array<i64: 128, 512>}, {transform_indices = @transform_2, window_bounds = array<i64: 1, 512>}, {transform_indices = @transform_3, window_bounds = array<i64: 512, 128>}, {pipeline_mode = #tpu.pipeline_mode<synchronous>, transform_indices = @transform_4, window_bounds = array<i64: 1, 128>}, {transform_indices = @transform_5, window_bounds = array<i64: 128, 128>}]} {
    %c0_i32 = arith.constant 0 : i32
    %0 = arith.cmpi eq, %arg1, %c0_i32 : i32
    %1 = arith.extui %0 : i1 to i32
    %c0_i32_0 = arith.constant 0 : i32
    %2 = arith.cmpi ne, %1, %c0_i32_0 : i32
    scf.if %2 {
      %cst_20 = arith.constant 0.000000e+00 : f32
      %33 = vector.broadcast %cst_20 : f32 to vector<128x128xf32>
      %c0_21 = arith.constant 0 : index
      %c0_22 = arith.constant 0 : index
      %34 = vector.load %arg8[%c0_21, %c0_22] : memref<128x128xf32, #tpu.memory_space<vmem>>, vector<128x128xf32>
      tpu.vector_store %arg8[%c0_21, %c0_22], %33 {strides = array<i32>} : memref<128x128xf32, #tpu.memory_space<vmem>>, vector<128x128xf32>,
    } else {
    }
    %c0 = arith.constant 0 : index
    %c0_1 = arith.constant 0 : index
    %3 = vector.load %arg2[%c0, %c0_1] : memref<128x128xf32, #tpu.memory_space<vmem>>, vector<128x128xf32>
    %4 = arith.truncf %3 : vector<128x128xf32> to vector<128x128xbf16>
    %c0_2 = arith.constant 0 : index
    %c0_3 = arith.constant 0 : index
    %5 = vector.load %arg3[%c0_2, %c0_3] : memref<128x512xbf16, #tpu.memory_space<vmem>>, vector<128x512xbf16>
    %cst = arith.constant dense<0.000000e+00> : vector<128x512xf32>
    %6 = tpu.matmul %4, %5, %cst {dimension_numbers = #tpu.dot_dimension_numbers<[1], [0], [0], [1], [0, 0, 1, 1], [], []>} : vector<128x128xbf16>, vector<128x512xbf16>, vector<128x512xf32> -> vector<128x512xf32>
    %c0_4 = arith.constant 0 : index
    %c0_5 = arith.constant 0 : index
    %7 = vector.load %arg4[%c0_4, %c0_5] : memref<1x512xf32, #tpu.memory_space<vmem>>, vector<1x512xf32>
    %8 = vector.broadcast %7 : vector<1x512xf32> to vector<128x512xf32>
    %9 = arith.addf %6, %8 : vector<128x512xf32>
    %cst_6 = arith.constant 0.797884583 : f32
    %10 = vector.broadcast %cst_6 : f32 to vector<128x512xf32>
    %11 = arith.mulf %10, %9 : vector<128x512xf32>
    %12 = arith.mulf %9, %9 : vector<128x512xf32>
    %cst_7 = arith.constant 4.471500e-02 : f32
    %13 = vector.broadcast %cst_7 : f32 to vector<128x512xf32>
    %14 = arith.mulf %13, %12 : vector<128x512xf32>
    %cst_8 = arith.constant 1.000000e+00 : f32
    %15 = vector.broadcast %cst_8 : f32 to vector<128x512xf32>
    %16 = arith.addf %15, %14 : vector<128x512xf32>
    %17 = arith.mulf %11, %16 : vector<128x512xf32>
    %cst_9 = arith.constant 5.000000e-01 : f32
    %18 = vector.broadcast %cst_9 : f32 to vector<128x512xf32>
    %19 = arith.mulf %18, %9 : vector<128x512xf32>
    %20 = math.tanh %17 : vector<128x512xf32>
    %cst_10 = arith.constant 1.000000e+00 : f32
    %21 = vector.broadcast %cst_10 : f32 to vector<128x512xf32>
    %22 = arith.addf %21, %20 : vector<128x512xf32>
    %23 = arith.mulf %19, %22 : vector<128x512xf32>
    %c0_11 = arith.constant 0 : index
    %c0_12 = arith.constant 0 : index
    %24 = vector.load %arg5[%c0_11, %c0_12] : memref<512x128xbf16, #tpu.memory_space<vmem>>, vector<512x128xbf16>
    %c0_13 = arith.constant 0 : index
    %c0_14 = arith.constant 0 : index
    %25 = vector.load %arg8[%c0_13, %c0_14] : memref<128x128xf32, #tpu.memory_space<vmem>>, vector<128x128xf32>
    %26 = arith.truncf %23 : vector<128x512xf32> to vector<128x512xbf16>
    %cst_15 = arith.constant dense<0.000000e+00> : vector<128x128xf32>
    %27 = tpu.matmul %26, %24, %cst_15 {dimension_numbers = #tpu.dot_dimension_numbers<[1], [0], [0], [1], [0, 0, 1, 1], [], []>} : vector<128x512xbf16>, vector<512x128xbf16>, vector<128x128xf32> -> vector<128x128xf32>
    %28 = arith.addf %25, %27 : vector<128x128xf32>
    %c0_16 = arith.constant 0 : index
    %c0_17 = arith.constant 0 : index
    %29 = vector.load %arg8[%c0_16, %c0_17] : memref<128x128xf32, #tpu.memory_space<vmem>>, vector<128x128xf32>
    tpu.vector_store %arg8[%c0_16, %c0_17], %28 {strides = array<i32>} : memref<128x128xf32, #tpu.memory_space<vmem>>, vector<128x128xf32>,
    %c0_i32_18 = arith.constant 0 : i32
    %30 = arith.cmpi eq, %arg1, %c0_i32_18 : i32
    %31 = arith.extui %30 : i1 to i32
    %c0_i32_19 = arith.constant 0 : i32
    %32 = arith.cmpi ne, %31, %c0_i32_19 : i32
    scf.if %32 {
      %c0_20 = arith.constant 0 : index
      %c0_21 = arith.constant 0 : index
      %33 = vector.load %arg8[%c0_20, %c0_21] : memref<128x128xf32, #tpu.memory_space<vmem>>, vector<128x128xf32>
      %c0_22 = arith.constant 0 : index
      %c0_23 = arith.constant 0 : index
      %34 = vector.load %arg6[%c0_22, %c0_23] : memref<1x128xf32, #tpu.memory_space<vmem>>, vector<1x128xf32>
      %35 = vector.broadcast %34 : vector<1x128xf32> to vector<128x128xf32>
      %36 = arith.addf %33, %35 : vector<128x128xf32>
      %c0_24 = arith.constant 0 : index
      %c0_25 = arith.constant 0 : index
      %37 = vector.load %arg7[%c0_24, %c0_25] : memref<128x128xf32, #tpu.memory_space<vmem>>, vector<128x128xf32>
      tpu.vector_store %arg7[%c0_24, %c0_25], %36 {strides = array<i32>} : memref<128x128xf32, #tpu.memory_space<vmem>>, vector<128x128xf32>,
    } else {
    }
    return
  }
  func.func @transform_0(%arg0: i32, %arg1: i32) -> (i32, i32) {
    %c0_i32 = arith.constant 0 : i32
    %c0_i32_0 = arith.constant 0 : i32
    return %arg0, %c0_i32 : i32, i32
  }
  func.func @transform_1(%arg0: i32, %arg1: i32) -> (i32, i32) {
    %c0_i32 = arith.constant 0 : i32
    %c0_i32_0 = arith.constant 0 : i32
    return %c0_i32, %arg1 : i32, i32
  }
  func.func @transform_2(%arg0: i32, %arg1: i32) -> (i32, i32) {
    %c0_i32 = arith.constant 0 : i32
    %c0_i32_0 = arith.constant 0 : i32
    return %c0_i32, %arg1 : i32, i32
  }
  func.func @transform_3(%arg0: i32, %arg1: i32) -> (i32, i32) {
    %c0_i32 = arith.constant 0 : i32
    %c0_i32_0 = arith.constant 0 : i32
    return %arg1, %c0_i32 : i32, i32
  }
  func.func @transform_4(%arg0: i32, %arg1: i32) -> (i32, i32) {
    %c0_i32 = arith.constant 0 : i32
    %c0_i32_0 = arith.constant 0 : i32
    %c0_i32_1 = arith.constant 0 : i32
    return %c0_i32, %c0_i32_0 : i32, i32
  }
  func.func @transform_5(%arg0: i32, %arg1: i32) -> (i32, i32) {
    %c0_i32 = arith.constant 0 : i32
    %c0_i32_0 = arith.constant 0 : i32
    return %arg0, %c0_i32 : i32, i32
  }
}

</mosaic_0001>

<llo_original>
// kernel: tpu_custom_call.1
$region0: #{tpu_custom_call.1}
  #allocation0 [shape = 'u32[]', space=smem, size = 0x4, offset = 0x4, fixed_abs, tag = 'smem constant byte address 0x4 - core index']
  #allocation1 [shape = 'u32[144,128]{1,0:T(1,128)}', space=vmem, size = 0x12000, scoped, tag = 'internal scratch']
  #allocation2 [shape = 'f32[128,128]{1,0:T(8,128)}', space=vmem, size = 0x10000, scoped, tag = 'scratch operand']
  %s0 = inlined_call_operand.hbm [shape: f32[128,128], index: 0, kind: input, shape index: {}]
  %s1 = inlined_call_operand.hbm [shape: bf16[128,512], index: 1, kind: input, shape index: {}]
  %s2 = inlined_call_operand.vmem [shape: f32[1,512], index: 2, kind: input, shape index: {}]
  %s3 = inlined_call_operand.hbm [shape: bf16[512,128], index: 3, kind: input, shape index: {}]
  %s4 = inlined_call_operand.vmem [shape: f32[1,128], index: 4, kind: input, shape index: {}]
  %s5 = inlined_call_operand.hbm [shape: f32[128,128], index: 5, kind: output, shape index: {}]
  %s6 = sld [smem:[#allocation0]]
  $region50: #{tpu_custom_call.1} parent=0
    _
  %s8 = ssub.s32 1, %s6
  %s9 = scalar_select 0, %s8, %s6
  $region1: #{tpu_custom_call.1} parent=0
    #allocation3 [shape = 'u8[65536]{0}', space=vmem, size = 0x10000, scoped, tag = 'input window, operand 0, single buffered']
    #allocation4 [shape = 's32[1]{0}', space=sflag, size = 0x4, scoped, tag = 'scoped memory for tpu_custom_call.1']
    #allocation5 [shape = 's32[1]{0}', space=sflag, size = 0x4, scoped, tag = 'scoped memory for tpu_custom_call.1']
    #allocation6 [shape = 'u8[131072]{0}', space=vmem, size = 0x20000, scoped, tag = 'input window, operand 1, single buffered']
    #allocation7 [shape = 's32[1]{0}', space=sflag, size = 0x4, scoped, tag = 'scoped memory for tpu_custom_call.1']
    #allocation8 [shape = 'u8[131072]{0}', space=vmem, size = 0x20000, scoped, tag = 'input window, operand 3, single buffered']
    #allocation9 [shape = 'u8[65536]{0}', space=vmem, size = 0x10000, scoped, tag = 'output window, operand 0, single buffered']
    %10 = vsyncpa [#allocation4], 0
    %11 = vsyncpa [#allocation7], 0
    %12 = vsyncpa [#allocation5], 0
    // Predicated region
    $region2: #{tpu_custom_call.1} parent=1 // pred_check
      _
    $region3: #{tpu_custom_call.1} parent=1 // pred_check_branch
      %14 = sbr.rel (0) target = $region5
    $region4: #{tpu_custom_call.1} parent=1 // pred_region
      %s16 = ssub.s32 2048, 2048
      %17 = vsyncadd [#allocation4], %s16
      %s18 = sshll.u32 [#allocation3], 4
      %s19 = int_to_ptr.vmem [resolvable:$true] %s18
      %24 = dma.hbm_to_vmem [thread:$0]  %s0, 2048, %s19, [#allocation4], 128, 128, 8
    $region5: #{tpu_custom_call.1} parent=1 // pred_fallthru
      _
    // Predicated region
    $region6: #{tpu_custom_call.1} parent=1 // pred_check
      _
    $region7: #{tpu_custom_call.1} parent=1 // pred_check_branch
      %26 = sbr.rel (0) target = $region9
    $region8: #{tpu_custom_call.1} parent=1 // pred_region
      %s28 = ssub.s32 4096, 4096
      %29 = vsyncadd [#allocation7], %s28
      %s30 = sshll.u32 [#allocation6], 4
      %s31 = int_to_ptr.vmem [resolvable:$true] %s30
      %36 = dma.hbm_to_vmem [thread:$0]  %s1, 4096, %s31, [#allocation7], 256, 256, 16
    $region9: #{tpu_custom_call.1} parent=1 // pred_fallthru
      _
    // Predicated region
    $region10: #{tpu_custom_call.1} parent=1 // pred_check
      _
    $region11: #{tpu_custom_call.1} parent=1 // pred_check_branch
      %38 = sbr.rel (0) target = $region13
    $region12: #{tpu_custom_call.1} parent=1 // pred_region
      _
    $region13: #{tpu_custom_call.1} parent=1 // pred_fallthru
      _
    // Predicated region
    $region14: #{tpu_custom_call.1} parent=1 // pred_check
      _
    $region15: #{tpu_custom_call.1} parent=1 // pred_check_branch
      %40 = sbr.rel (0) target = $region17
    $region16: #{tpu_custom_call.1} parent=1 // pred_region
      %s42 = ssub.s32 4096, 4096
      %43 = vsyncadd [#allocation7], %s42
      %s44 = sshll.u32 [#allocation8], 4
      %s45 = int_to_ptr.vmem [resolvable:$true] %s44
      %50 = dma.hbm_to_vmem [thread:$0]  %s3, 4096, %s45, [#allocation7], 64, 64, 4
    $region17: #{tpu_custom_call.1} parent=1 // pred_fallthru
      _
    // Predicated region
    $region18: #{tpu_custom_call.1} parent=1 // pred_check
      _
    $region19: #{tpu_custom_call.1} parent=1 // pred_check_branch
      %52 = sbr.rel (0) target = $region21
    $region20: #{tpu_custom_call.1} parent=1 // pred_region
      _
    $region21: #{tpu_custom_call.1} parent=1 // pred_fallthru
      _
    // Predicated region
    $region22: #{tpu_custom_call.1} parent=1 // pred_check
      _
    $region23: #{tpu_custom_call.1} parent=1 // pred_check_branch
      %54 = sbr.rel (0) target = $region25
    $region24: #{tpu_custom_call.1} parent=1 // pred_region
      %55 = dma.done [#allocation4], 2048
    $region25: #{tpu_custom_call.1} parent=1 // pred_fallthru
      _
    // Predicated region
    $region26: #{tpu_custom_call.1} parent=1 // pred_check
      _
    $region27: #{tpu_custom_call.1} parent=1 // pred_check_branch
      %57 = sbr.rel (0) target = $region29
    $region28: #{tpu_custom_call.1} parent=1 // pred_region
      %58 = dma.done [#allocation7], 4096
    $region29: #{tpu_custom_call.1} parent=1 // pred_fallthru
      _
    // Predicated region
    $region30: #{tpu_custom_call.1} parent=1 // pred_check
      _
    $region31: #{tpu_custom_call.1} parent=1 // pred_check_branch
      %60 = sbr.rel (0) target = $region33
    $region32: #{tpu_custom_call.1} parent=1 // pred_region
      %61 = dma.done [#allocation7], 4096
    $region33: #{tpu_custom_call.1} parent=1 // pred_fallthru
      _
    %p63 = scmp.eq.s32.totalorder 0, 0
    // Predicated region
    $region34: #{tpu_custom_call.1} parent=1 // pred_check
      %p64 = pneg %p63
    $region35: #{tpu_custom_call.1} parent=1 // pred_check_branch
      %66 = sbr.rel (%p64) target = $region37
    $region36: #{tpu_custom_call.1} parent=1 // pred_region
      %67 = vst [vmem:[#allocation2] sm:$0xff] 0.0
      %68 = vst [vmem:[#allocation2 + $0x8] sm:$0xff] 0.0
      %69 = vst [vmem:[#allocation2 + $0x10] sm:$0xff] 0.0
      %70 = vst [vmem:[#allocation2 + $0x18] sm:$0xff] 0.0
      %71 = vst [vmem:[#allocation2 + $0x20] sm:$0xff] 0.0
      %72 = vst [vmem:[#allocation2 + $0x28] sm:$0xff] 0.0
      %73 = vst [vmem:[#allocation2 + $0x30] sm:$0xff] 0.0
      %74 = vst [vmem:[#allocation2 + $0x38] sm:$0xff] 0.0
      %75 = vst [vmem:[#allocation2 + $0x40] sm:$0xff] 0.0
      %76 = vst [vmem:[#allocation2 + $0x48] sm:$0xff] 0.0
      %77 = vst [vmem:[#allocation2 + $0x50] sm:$0xff] 0.0
      %78 = vst [vmem:[#allocation2 + $0x58] sm:$0xff] 0.0
      %79 = vst [vmem:[#allocation2 + $0x60] sm:$0xff] 0.0
      %80 = vst [vmem:[#allocation2 + $0x68] sm:$0xff] 0.0
      %81 = vst [vmem:[#allocation2 + $0x70] sm:$0xff] 0.0
      %82 = vst [vmem:[#allocation2 + $0x78] sm:$0xff] 0.0
    $region37: #{tpu_custom_call.1} parent=1 // pred_fallthru
      _
    %v83 = vld [vmem:[#allocation3] sm:$0xff]
    %v84 = vld [vmem:[#allocation3 + $0x8] sm:$0xff]
    %v85 = vld [vmem:[#allocation3 + $0x10] sm:$0xff]
    %v86 = vld [vmem:[#allocation3 + $0x18] sm:$0xff]
    %v87 = vld [vmem:[#allocation3 + $0x20] sm:$0xff]
    %v88 = vld [vmem:[#allocation3 + $0x28] sm:$0xff]
    %v89 = vld [vmem:[#allocation3 + $0x30] sm:$0xff]
    %v90 = vld [vmem:[#allocation3 + $0x38] sm:$0xff]
    %v91 = vld [vmem:[#allocation3 + $0x40] sm:$0xff]
    %v92 = vld [vmem:[#allocation3 + $0x48] sm:$0xff]
    %v93 = vld [vmem:[#allocation3 + $0x50] sm:$0xff]
    %v94 = vld [vmem:[#allocation3 + $0x58] sm:$0xff]
    %v95 = vld [vmem:[#allocation3 + $0x60] sm:$0xff]
    %v96 = vld [vmem:[#allocation3 + $0x68] sm:$0xff]
    %v97 = vld [vmem:[#allocation3 + $0x70] sm:$0xff]
    %v98 = vld [vmem:[#allocation3 + $0x78] sm:$0xff]
    %v99 = vpack.c.bf16 %v84, %v83
    %v100 = vpack.c.bf16 %v86, %v85
    %v101 = vpack.c.bf16 %v88, %v87
    %v102 = vpack.c.bf16 %v90, %v89
    %v103 = vpack.c.bf16 %v92, %v91
    %v104 = vpack.c.bf16 %v94, %v93
    %v105 = vpack.c.bf16 %v96, %v95
    %v106 = vpack.c.bf16 %v98, %v97
    %v107 = vld [vmem:[#allocation6] sm:$0xff]
    %v108 = vld [vmem:[#allocation6 + $0x8] sm:$0xff]
    %v109 = vld [vmem:[#allocation6 + $0x10] sm:$0xff]
    %v110 = vld [vmem:[#allocation6 + $0x18] sm:$0xff]
    %v111 = vld [vmem:[#allocation6 + $0x20] sm:$0xff]
    %v112 = vld [vmem:[#allocation6 + $0x28] sm:$0xff]
    %v113 = vld [vmem:[#allocation6 + $0x30] sm:$0xff]
    %v114 = vld [vmem:[#allocation6 + $0x38] sm:$0xff]
    %v115 = vld [vmem:[#allocation6 + $0x40] sm:$0xff]
    %v116 = vld [vmem:[#allocation6 + $0x48] sm:$0xff]
    %v117 = vld [vmem:[#allocation6 + $0x50] sm:$0xff]
    %v118 = vld [vmem:[#allocation6 + $0x58] sm:$0xff]
    %v119 = vld [vmem:[#allocation6 + $0x60] sm:$0xff]
    %v120 = vld [vmem:[#allocation6 + $0x68] sm:$0xff]
    %v121 = vld [vmem:[#allocation6 + $0x70] sm:$0xff]
    %v122 = vld [vmem:[#allocation6 + $0x78] sm:$0xff]
    %v123 = vld [vmem:[#allocation6 + $0x80] sm:$0xff]
    %v124 = vld [vmem:[#allocation6 + $0x88] sm:$0xff]
    %v125 = vld [vmem:[#allocation6 + $0x90] sm:$0xff]
    %v126 = vld [vmem:[#allocation6 + $0x98] sm:$0xff]
    %v127 = vld [vmem:[#allocation6 + $0xa0] sm:$0xff]
    %v128 = vld [vmem:[#allocation6 + $0xa8] sm:$0xff]
    %v129 = vld [vmem:[#allocation6 + $0xb0] sm:$0xff]
    %v130 = vld [vmem:[#allocation6 + $0xb8] sm:$0xff]
    %v131 = vld [vmem:[#allocation6 + $0xc0] sm:$0xff]
    %v132 = vld [vmem:[#allocation6 + $0xc8] sm:$0xff]
    %v133 = vld [vmem:[#allocation6 + $0xd0] sm:$0xff]
    %v134 = vld [vmem:[#allocation6 + $0xd8] sm:$0xff]
    %v135 = vld [vmem:[#allocation6 + $0xe0] sm:$0xff]
    %v136 = vld [vmem:[#allocation6 + $0xe8] sm:$0xff]
    %v137 = vld [vmem:[#allocation6 + $0xf0] sm:$0xff]
    %v138 = vld [vmem:[#allocation6 + $0xf8] sm:$0xff]
    %v139 = vld [vmem:[%s2] sm:$0xf]
    %v141 = vlaneseq
    %v142 = vshrl.u32 %v141, 7
    %v143 = vsub.s32 0, %v142
    %v144 = vrot.slane %v139, %v143
    %v145 = vlaneseq
    %v146 = vshrl.u32 %v145, 7
    %v147 = vsub.s32 1, %v146
    %v148 = vrot.slane %v139, %v147
    %v149 = vlaneseq
    %v150 = vshrl.u32 %v149, 7
    %v151 = vsub.s32 2, %v150
    %v152 = vrot.slane %v139, %v151
    %v153 = vlaneseq
    %v154 = vshrl.u32 %v153, 7
    %v155 = vsub.s32 3, %v154
    %v156 = vrot.slane %v139, %v155
    %v193 = vunpack.c.l.b16 %v107
    %v194 = vunpack.c.h.b16 %v107
    %v195 = vunpack.c.l.b16 %v108
    %v196 = vunpack.c.h.b16 %v108
    %v197 = vunpack.c.l.b16 %v109
    %v198 = vunpack.c.h.b16 %v109
    %v199 = vunpack.c.l.b16 %v110
    %v200 = vunpack.c.h.b16 %v110
    %v201 = vunpack.c.l.b16 %v111
    %v202 = vunpack.c.h.b16 %v111
    %v203 = vunpack.c.l.b16 %v112
    %v204 = vunpack.c.h.b16 %v112
    %v205 = vunpack.c.l.b16 %v113
    %v206 = vunpack.c.h.b16 %v113
    %v207 = vunpack.c.l.b16 %v114
    %v208 = vunpack.c.h.b16 %v114
    %v209 = vunpack.c.l.b16 %v115
    %v210 = vunpack.c.h.b16 %v115
    %v211 = vunpack.c.l.b16 %v116
    %v212 = vunpack.c.h.b16 %v116
    %v213 = vunpack.c.l.b16 %v117
    %v214 = vunpack.c.h.b16 %v117
    %v215 = vunpack.c.l.b16 %v118
    %v216 = vunpack.c.h.b16 %v118
    %v217 = vunpack.c.l.b16 %v119
    %v218 = vunpack.c.h.b16 %v119
    %v219 = vunpack.c.l.b16 %v120
    %v220 = vunpack.c.h.b16 %v120
    %v221 = vunpack.c.l.b16 %v121
    %v222 = vunpack.c.h.b16 %v121
    %v223 = vunpack.c.l.b16 %v122
    %v224 = vunpack.c.h.b16 %v122
    %v225 = vunpack.c.l.b16 %v123
    %v226 = vunpack.c.h.b16 %v123
    %v227 = vunpack.c.l.b16 %v124
    %v228 = vunpack.c.h.b16 %v124
    %v229 = vunpack.c.l.b16 %v125
    %v230 = vunpack.c.h.b16 %v125
    %v231 = vunpack.c.l.b16 %v126
    %v232 = vunpack.c.h.b16 %v126
    %v233 = vunpack.c.l.b16 %v127
    %v234 = vunpack.c.h.b16 %v127
    %v235 = vunpack.c.l.b16 %v128
    %v236 = vunpack.c.h.b16 %v128
    %v237 = vunpack.c.l.b16 %v129
    %v238 = vunpack.c.h.b16 %v129
    %v239 = vunpack.c.l.b16 %v130
    %v240 = vunpack.c.h.b16 %v130
    %v241 = vunpack.c.l.b16 %v131
    %v242 = vunpack.c.h.b16 %v131
    %v243 = vunpack.c.l.b16 %v132
    %v244 = vunpack.c.h.b16 %v132
    %v245 = vunpack.c.l.b16 %v133
    %v246 = vunpack.c.h.b16 %v133
    %v247 = vunpack.c.l.b16 %v134
    %v248 = vunpack.c.h.b16 %v134
    %v249 = vunpack.c.l.b16 %v135
    %v250 = vunpack.c.h.b16 %v135
    %v251 = vunpack.c.l.b16 %v136
    %v252 = vunpack.c.h.b16 %v136
    %v253 = vunpack.c.l.b16 %v137
    %v254 = vunpack.c.h.b16 %v137
    %v255 = vunpack.c.l.b16 %v138
    %v256 = vunpack.c.h.b16 %v138
    %v257 = vpack.c.b16 %v197, %v193
    %v258 = vpack.c.b16 %v198, %v194
    %v259 = vpack.c.b16 %v199, %v195
    %v260 = vpack.c.b16 %v200, %v196
    %v261 = vpack.c.b16 %v205, %v201
    %v262 = vpack.c.b16 %v206, %v202
    %v263 = vpack.c.b16 %v207, %v203
    %v264 = vpack.c.b16 %v208, %v204
    %v265 = vpack.c.b16 %v213, %v209
    %v266 = vpack.c.b16 %v214, %v210
    %v267 = vpack.c.b16 %v215, %v211
    %v268 = vpack.c.b16 %v216, %v212
    %v269 = vpack.c.b16 %v221, %v217
    %v270 = vpack.c.b16 %v222, %v218
    %v271 = vpack.c.b16 %v223, %v219
    %v272 = vpack.c.b16 %v224, %v220
    %v273 = vpack.c.b16 %v229, %v225
    %v274 = vpack.c.b16 %v230, %v226
    %v275 = vpack.c.b16 %v231, %v227
    %v276 = vpack.c.b16 %v232, %v228
    %v277 = vpack.c.b16 %v237, %v233
    %v278 = vpack.c.b16 %v238, %v234
    %v279 = vpack.c.b16 %v239, %v235
    %v280 = vpack.c.b16 %v240, %v236
    %v281 = vpack.c.b16 %v245, %v241
    %v282 = vpack.c.b16 %v246, %v242
    %v283 = vpack.c.b16 %v247, %v243
    %v284 = vpack.c.b16 %v248, %v244
    %v285 = vpack.c.b16 %v253, %v249
    %v286 = vpack.c.b16 %v254, %v250
    %v287 = vpack.c.b16 %v255, %v251
    %v288 = vpack.c.b16 %v256, %v252
    %321 = vmatprep.subr.bf16.mxu0 %v258
    %322 = vmatpush1.bf16.msra.mxu0 %v257
    %323 = vmatprep.subr.bf16.mxu0 %v262
    %324 = vmatpush1.bf16.msra.mxu0 %v261
    %325 = vmatprep.subr.bf16.mxu0 %v266
    %326 = vmatpush1.bf16.msra.mxu0 %v265
    %327 = vmatprep.subr.bf16.mxu0 %v270
    %328 = vmatpush1.bf16.msra.mxu0 %v269
    %329 = vmatprep.subr.bf16.mxu0 %v274
    %330 = vmatpush1.bf16.msra.mxu0 %v273
    %331 = vmatprep.subr.bf16.mxu0 %v278
    %332 = vmatpush1.bf16.msra.mxu0 %v277
    %333 = vmatprep.subr.bf16.mxu0 %v282
    %334 = vmatpush1.bf16.msra.mxu0 %v281
    %335 = vmatprep.subr.bf16.mxu0 %v286
    %336 = vmatpush1.bf16.msra.mxu0 %v285
    %337 = vmatprep.subr.bf16.mxu0 0
    %338 = vmatpush1.bf16.msra.mxu0 0
    %339 = vmatprep.subr.bf16.mxu0 0
    %340 = vmatpush1.bf16.msra.mxu0 0
    %341 = vmatprep.subr.bf16.mxu0 0
    %342 = vmatpush1.bf16.msra.mxu0 0
    %343 = vmatprep.subr.bf16.mxu0 0
    %344 = vmatpush1.bf16.msra.mxu0 0
    %345 = vmatprep.subr.bf16.mxu0 0
    %346 = vmatpush1.bf16.msra.mxu0 0
    %347 = vmatprep.subr.bf16.mxu0 0
    %348 = vmatpush1.bf16.msra.mxu0 0
    %349 = vmatprep.subr.bf16.mxu0 0
    %350 = vmatpush1.bf16.msra.mxu0 0
    %351 = vmatprep.subr.bf16.mxu0 0
    %352 = vmatpush1.bf16.msra.mxu0 0
    %353 = vmatprep.mubr.bf16.mxu0 0
    %354 = vmatmul.mubr.bf16.gmra.mrb[0].mxu0 %v99
    %v355 = vpop.f32.mrb[0].mxu0
    %v356 = vadd.f32 %v144, %v355
    %v357 = vpop.f32.mrb[0].mxu0
    %v358 = vadd.f32 %v148, %v357
    %v359 = vpop.f32.mrb[0].mxu0
    %v360 = vadd.f32 %v144, %v359
    %v361 = vpop.f32.mrb[0].mxu0
    %v362 = vadd.f32 %v148, %v361
    %363 = vmatprep.mubr.bf16.mxu0 0
    %364 = vmatmul.mubr.bf16.gmra.mrb[0].mxu0 %v100
    %v365 = vpop.f32.mrb[0].mxu0
    %v366 = vadd.f32 %v144, %v365
    %v367 = vpop.f32.mrb[0].mxu0
    %v368 = vadd.f32 %v148, %v367
    %v369 = vpop.f32.mrb[0].mxu0
    %v370 = vadd.f32 %v144, %v369
    %v371 = vpop.f32.mrb[0].mxu0
    %v372 = vadd.f32 %v148, %v371
    %373 = vmatprep.mubr.bf16.mxu0 0
    %374 = vmatmul.mubr.bf16.gmra.mrb[0].mxu0 %v101
    %v375 = vpop.f32.mrb[0].mxu0
    %v376 = vadd.f32 %v144, %v375
    %v377 = vpop.f32.mrb[0].mxu0
    %v378 = vadd.f32 %v148, %v377
    %v379 = vpop.f32.mrb[0].mxu0
    %v380 = vadd.f32 %v144, %v379
    %v381 = vpop.f32.mrb[0].mxu0
    %v382 = vadd.f32 %v148, %v381
    %383 = vmatprep.mubr.bf16.mxu0 0
    %384 = vmatmul.mubr.bf16.gmra.mrb[0].mxu0 %v102
    %v385 = vpop.f32.mrb[0].mxu0
    %v386 = vadd.f32 %v144, %v385
    %v387 = vpop.f32.mrb[0].mxu0
    %v388 = vadd.f32 %v148, %v387
    %v389 = vpop.f32.mrb[0].mxu0
    %v390 = vadd.f32 %v144, %v389
    %v391 = vpop.f32.mrb[0].mxu0
    %v392 = vadd.f32 %v148, %v391
    %393 = vmatprep.mubr.bf16.mxu0 0
    %394 = vmatmul.mubr.bf16.gmra.mrb[0].mxu0 %v103
    %v395 = vpop.f32.mrb[0].mxu0
    %v396 = vadd.f32 %v144, %v395
    %v397 = vpop.f32.mrb[0].mxu0
    %v398 = vadd.f32 %v148, %v397
    %v399 = vpop.f32.mrb[0].mxu0
    %v400 = vadd.f32 %v144, %v399
    %v401 = vpop.f32.mrb[0].mxu0
    %v402 = vadd.f32 %v148, %v401
    %403 = vmatprep.mubr.bf16.mxu0 0
    %404 = vmatmul.mubr.bf16.gmra.mrb[0].mxu0 %v104
    %v405 = vpop.f32.mrb[0].mxu0
    %v406 = vadd.f32 %v144, %v405
    %v407 = vpop.f32.mrb[0].mxu0
    %v408 = vadd.f32 %v148, %v407
    %v409 = vpop.f32.mrb[0].mxu0
    %v410 = vadd.f32 %v144, %v409
    %v411 = vpop.f32.mrb[0].mxu0
    %v412 = vadd.f32 %v148, %v411
    %413 = vmatprep.mubr.bf16.mxu0 0
    %414 = vmatmul.mubr.bf16.gmra.mrb[0].mxu0 %v105
    %v415 = vpop.f32.mrb[0].mxu0
    %v416 = vadd.f32 %v144, %v415
    %v417 = vpop.f32.mrb[0].mxu0
    %v418 = vadd.f32 %v148, %v417
    %v419 = vpop.f32.mrb[0].mxu0
    %v420 = vadd.f32 %v144, %v419
    %v421 = vpop.f32.mrb[0].mxu0
    %v422 = vadd.f32 %v148, %v421
    %423 = vmatprep.mubr.bf16.mxu0 0
    %424 = vmatmul.mubr.bf16.gmra.mrb[0].mxu0 %v106
    %v425 = vpop.f32.mrb[0].mxu0
    %v426 = vadd.f32 %v144, %v425
    %v427 = vpop.f32.mrb[0].mxu0
    %v428 = vadd.f32 %v148, %v427
    %v429 = vpop.f32.mrb[0].mxu0
    %v430 = vadd.f32 %v144, %v429
    %v431 = vpop.f32.mrb[0].mxu0
    %v432 = vadd.f32 %v148, %v431
    %433 = vdwg.mxu0
    %434 = vmatprep.subr.bf16.mxu0 %v260
    %435 = vmatpush1.bf16.msra.mxu0 %v259
    %436 = vmatprep.subr.bf16.mxu0 %v264
    %437 = vmatpush1.bf16.msra.mxu0 %v263
    %438 = vmatprep.subr.bf16.mxu0 %v268
    %439 = vmatpush1.bf16.msra.mxu0 %v267
    %440 = vmatprep.subr.bf16.mxu0 %v272
    %441 = vmatpush1.bf16.msra.mxu0 %v271
    %442 = vmatprep.subr.bf16.mxu0 %v276
    %443 = vmatpush1.bf16.msra.mxu0 %v275
    %444 = vmatprep.subr.bf16.mxu0 %v280
    %445 = vmatpush1.bf16.msra.mxu0 %v279
    %446 = vmatprep.subr.bf16.mxu0 %v284
    %447 = vmatpush1.bf16.msra.mxu0 %v283
    %448 = vmatprep.subr.bf16.mxu0 %v288
    %449 = vmatpush1.bf16.msra.mxu0 %v287
    %450 = vmatprep.subr.bf16.mxu0 0
    %451 = vmatpush1.bf16.msra.mxu0 0
    %452 = vmatprep.subr.bf16.mxu0 0
    %453 = vmatpush1.bf16.msra.mxu0 0
    %454 = vmatprep.subr.bf16.mxu0 0
    %455 = vmatpush1.bf16.msra.mxu0 0
    %456 = vmatprep.subr.bf16.mxu0 0
    %457 = vmatpush1.bf16.msra.mxu0 0
    %458 = vmatprep.subr.bf16.mxu0 0
    %459 = vmatpush1.bf16.msra.mxu0 0
    %460 = vmatprep.subr.bf16.mxu0 0
    %461 = vmatpush1.bf16.msra.mxu0 0
    %462 = vmatprep.subr.bf16.mxu0 0
    %463 = vmatpush1.bf16.msra.mxu0 0
    %464 = vmatprep.subr.bf16.mxu0 0
    %465 = vmatpush1.bf16.msra.mxu0 0
    %466 = vmatprep.mubr.bf16.mxu0 0
    %467 = vmatmul.mubr.bf16.gmra.mrb[0].mxu0 %v99
    %v468 = vpop.f32.mrb[0].mxu0
    %v469 = vadd.f32 %v152, %v468
    %v470 = vpop.f32.mrb[0].mxu0
    %v471 = vadd.f32 %v156, %v470
    %v472 = vpop.f32.mrb[0].mxu0
    %v473 = vadd.f32 %v152, %v472
    %v474 = vpop.f32.mrb[0].mxu0
    %v475 = vadd.f32 %v156, %v474
    %476 = vmatprep.mubr.bf16.mxu0 0
    %477 = vmatmul.mubr.bf16.gmra.mrb[0].mxu0 %v100
    %v478 = vpop.f32.mrb[0].mxu0
    %v479 = vadd.f32 %v152, %v478
    %v480 = vpop.f32.mrb[0].mxu0
    %v481 = vadd.f32 %v156, %v480
    %v482 = vpop.f32.mrb[0].mxu0
    %v483 = vadd.f32 %v152, %v482
    %v484 = vpop.f32.mrb[0].mxu0
    %v485 = vadd.f32 %v156, %v484
    %486 = vmatprep.mubr.bf16.mxu0 0
    %487 = vmatmul.mubr.bf16.gmra.mrb[0].mxu0 %v101
    %v488 = vpop.f32.mrb[0].mxu0
    %v489 = vadd.f32 %v152, %v488
    %v490 = vpop.f32.mrb[0].mxu0
    %v491 = vadd.f32 %v156, %v490
    %v492 = vpop.f32.mrb[0].mxu0
    %v493 = vadd.f32 %v152, %v492
    %v494 = vpop.f32.mrb[0].mxu0
    %v495 = vadd.f32 %v156, %v494
    %496 = vmatprep.mubr.bf16.mxu0 0
    %497 = vmatmul.mubr.bf16.gmra.mrb[0].mxu0 %v102
    %v498 = vpop.f32.mrb[0].mxu0
    %v499 = vadd.f32 %v152, %v498
    %v500 = vpop.f32.mrb[0].mxu0
    %v501 = vadd.f32 %v156, %v500
    %v502 = vpop.f32.mrb[0].mxu0
    %v503 = vadd.f32 %v152, %v502
    %v504 = vpop.f32.mrb[0].mxu0
    %v505 = vadd.f32 %v156, %v504
    %506 = vmatprep.mubr.bf16.mxu0 0
    %507 = vmatmul.mubr.bf16.gmra.mrb[0].mxu0 %v103
    %v508 = vpop.f32.mrb[0].mxu0
    %v509 = vadd.f32 %v152, %v508
    %v510 = vpop.f32.mrb[0].mxu0
    %v511 = vadd.f32 %v156, %v510
    %v512 = vpop.f32.mrb[0].mxu0
    %v513 = vadd.f32 %v152, %v512
    %v514 = vpop.f32.mrb[0].mxu0
    %v515 = vadd.f32 %v156, %v514
    %516 = vmatprep.mubr.bf16.mxu0 0
    %517 = vmatmul.mubr.bf16.gmra.mrb[0].mxu0 %v104
    %v518 = vpop.f32.mrb[0].mxu0
    %v519 = vadd.f32 %v152, %v518
    %v520 = vpop.f32.mrb[0].mxu0
    %v521 = vadd.f32 %v156, %v520
    %v522 = vpop.f32.mrb[0].mxu0
    %v523 = vadd.f32 %v152, %v522
    %v524 = vpop.f32.mrb[0].mxu0
    %v525 = vadd.f32 %v156, %v524
    %526 = vmatprep.mubr.bf16.mxu0 0
    %527 = vmatmul.mubr.bf16.gmra.mrb[0].mxu0 %v105
    %v528 = vpop.f32.mrb[0].mxu0
    %v529 = vadd.f32 %v152, %v528
    %v530 = vpop.f32.mrb[0].mxu0
    %v531 = vadd.f32 %v156, %v530
    %v532 = vpop.f32.mrb[0].mxu0
    %v533 = vadd.f32 %v152, %v532
    %v534 = vpop.f32.mrb[0].mxu0
    %v535 = vadd.f32 %v156, %v534
    %536 = vmatprep.mubr.bf16.mxu0 0
    %537 = vmatmul.mubr.bf16.gmra.mrb[0].mxu0 %v106
    %v538 = vpop.f32.mrb[0].mxu0
    %v539 = vadd.f32 %v152, %v538
    %v540 = vpop.f32.mrb[0].mxu0
    %v541 = vadd.f32 %v156, %v540
    %v542 = vpop.f32.mrb[0].mxu0
    %v543 = vadd.f32 %v152, %v542
    %v544 = vpop.f32.mrb[0].mxu0
    %v545 = vadd.f32 %v156, %v544
    %546 = vdwg.mxu0
    %v547 = vmul.f32 %v356, 0.7978846
    %v548 = vmul.f32 %v358, 0.7978846
    %v549 = vmul.f32 %v469, 0.7978846
    %v550 = vmul.f32 %v471, 0.7978846
    %v551 = vmul.f32 %v360, 0.7978846
    %v552 = vmul.f32 %v362, 0.7978846
    %v553 = vmul.f32 %v473, 0.7978846
    %v554 = vmul.f32 %v475, 0.7978846
    %v555 = vmul.f32 %v366, 0.7978846
    %v556 = vmul.f32 %v368, 0.7978846
    %v557 = vmul.f32 %v479, 0.7978846
    %v558 = vmul.f32 %v481, 0.7978846
    %v559 = vmul.f32 %v370, 0.7978846
    %v560 = vmul.f32 %v372, 0.7978846
    %v561 = vmul.f32 %v483, 0.7978846
    %v562 = vmul.f32 %v485, 0.7978846
    %v563 = vmul.f32 %v376, 0.7978846
    %v564 = vmul.f32 %v378, 0.7978846
    %v565 = vmul.f32 %v489, 0.7978846
    %v566 = vmul.f32 %v491, 0.7978846
    %v567 = vmul.f32 %v380, 0.7978846
    %v568 = vmul.f32 %v382, 0.7978846
    %v569 = vmul.f32 %v493, 0.7978846
    %v570 = vmul.f32 %v495, 0.7978846
    %v571 = vmul.f32 %v386, 0.7978846
    %v572 = vmul.f32 %v388, 0.7978846
    %v573 = vmul.f32 %v499, 0.7978846
    %v574 = vmul.f32 %v501, 0.7978846
    %v575 = vmul.f32 %v390, 0.7978846
    %v576 = vmul.f32 %v392, 0.7978846
    %v577 = vmul.f32 %v503, 0.7978846
    %v578 = vmul.f32 %v505, 0.7978846
    %v579 = vmul.f32 %v396, 0.7978846
    %v580 = vmul.f32 %v398, 0.7978846
    %v581 = vmul.f32 %v509, 0.7978846
    %v582 = vmul.f32 %v511, 0.7978846
    %v583 = vmul.f32 %v400, 0.7978846
    %v584 = vmul.f32 %v402, 0.7978846
    %v585 = vmul.f32 %v513, 0.7978846
    %v586 = vmul.f32 %v515, 0.7978846
    %v587 = vmul.f32 %v406, 0.7978846
    %v588 = vmul.f32 %v408, 0.7978846
    %v589 = vmul.f32 %v519, 0.7978846
    %v590 = vmul.f32 %v521, 0.7978846
    %v591 = vmul.f32 %v410, 0.7978846
    %v592 = vmul.f32 %v412, 0.7978846
    %v593 = vmul.f32 %v523, 0.7978846
    %v594 = vmul.f32 %v525, 0.7978846
    %v595 = vmul.f32 %v416, 0.7978846
    %v596 = vmul.f32 %v418, 0.7978846
    %v597 = vmul.f32 %v529, 0.7978846
    %v598 = vmul.f32 %v531, 0.7978846
    %v599 = vmul.f32 %v420, 0.7978846
    %v600 = vmul.f32 %v422, 0.7978846
    %v601 = vmul.f32 %v533, 0.7978846
    %v602 = vmul.f32 %v535, 0.7978846
    %v603 = vmul.f32 %v426, 0.7978846
    %v604 = vmul.f32 %v428, 0.7978846
    %v605 = vmul.f32 %v539, 0.7978846
    %v606 = vmul.f32 %v541, 0.7978846
    %v607 = vmul.f32 %v430, 0.7978846
    %v608 = vmul.f32 %v432, 0.7978846
    %v609 = vmul.f32 %v543, 0.7978846
    %v610 = vmul.f32 %v545, 0.7978846
    %v611 = vmul.f32 %v356, %v356
    %v612 = vmul.f32 %v358, %v358
    %v613 = vmul.f32 %v469, %v469
    %v614 = vmul.f32 %v471, %v471
    %v615 = vmul.f32 %v360, %v360
    %v616 = vmul.f32 %v362, %v362
    %v617 = vmul.f32 %v473, %v473
    %v618 = vmul.f32 %v475, %v475
    %v619 = vmul.f32 %v366, %v366
    %v620 = vmul.f32 %v368, %v368
    %v621 = vmul.f32 %v479, %v479
    %v622 = vmul.f32 %v481, %v481
    %v623 = vmul.f32 %v370, %v370
    %v624 = vmul.f32 %v372, %v372
    %v625 = vmul.f32 %v483, %v483
    %v626 = vmul.f32 %v485, %v485
    %v627 = vmul.f32 %v376, %v376
    %v628 = vmul.f32 %v378, %v378
    %v629 = vmul.f32 %v489, %v489
    %v630 = vmul.f32 %v491, %v491
    %v631 = vmul.f32 %v380, %v380
    %v632 = vmul.f32 %v382, %v382
    %v633 = vmul.f32 %v493, %v493
    %v634 = vmul.f32 %v495, %v495
    %v635 = vmul.f32 %v386, %v386
    %v636 = vmul.f32 %v388, %v388
    %v637 = vmul.f32 %v499, %v499
    %v638 = vmul.f32 %v501, %v501
    %v639 = vmul.f32 %v390, %v390
    %v640 = vmul.f32 %v392, %v392
    %v641 = vmul.f32 %v503, %v503
    %v642 = vmul.f32 %v505, %v505
    %v643 = vmul.f32 %v396, %v396
    %v644 = vmul.f32 %v398, %v398
    %v645 = vmul.f32 %v509, %v509
    %v646 = vmul.f32 %v511, %v511
    %v647 = vmul.f32 %v400, %v400
    %v648 = vmul.f32 %v402, %v402
    %v649 = vmul.f32 %v513, %v513
    %v650 = vmul.f32 %v515, %v515
    %v651 = vmul.f32 %v406, %v406
    %v652 = vmul.f32 %v408, %v408
    %v653 = vmul.f32 %v519, %v519
    %v654 = vmul.f32 %v521, %v521
    %v655 = vmul.f32 %v410, %v410
    %v656 = vmul.f32 %v412, %v412
    %v657 = vmul.f32 %v523, %v523
    %v658 = vmul.f32 %v525, %v525
    %v659 = vmul.f32 %v416, %v416
    %v660 = vmul.f32 %v418, %v418
    %v661 = vmul.f32 %v529, %v529
    %v662 = vmul.f32 %v531, %v531
    %v663 = vmul.f32 %v420, %v420
    %v664 = vmul.f32 %v422, %v422
    %v665 = vmul.f32 %v533, %v533
    %v666 = vmul.f32 %v535, %v535
    %v667 = vmul.f32 %v426, %v426
    %v668 = vmul.f32 %v428, %v428
    %v669 = vmul.f32 %v539, %v539
    %v670 = vmul.f32 %v541, %v541
    %v671 = vmul.f32 %v430, %v430
    %v672 = vmul.f32 %v432, %v432
    %v673 = vmul.f32 %v543, %v543
    %v674 = vmul.f32 %v545, %v545
    %v675 = vmul.f32 %v611, 0.044715
    %v676 = vmul.f32 %v612, 0.044715
    %v677 = vmul.f32 %v613, 0.044715
    %v678 = vmul.f32 %v614, 0.044715
    %v679 = vmul.f32 %v615, 0.044715
    %v680 = vmul.f32 %v616, 0.044715
    %v681 = vmul.f32 %v617, 0.044715
    %v682 = vmul.f32 %v618, 0.044715
    %v683 = vmul.f32 %v619, 0.044715
    %v684 = vmul.f32 %v620, 0.044715
    %v685 = vmul.f32 %v621, 0.044715
    %v686 = vmul.f32 %v622, 0.044715
    %v687 = vmul.f32 %v623, 0.044715
    %v688 = vmul.f32 %v624, 0.044715
    %v689 = vmul.f32 %v625, 0.044715
    %v690 = vmul.f32 %v626, 0.044715
    %v691 = vmul.f32 %v627, 0.044715
    %v692 = vmul.f32 %v628, 0.044715
    %v693 = vmul.f32 %v629, 0.044715
    %v694 = vmul.f32 %v630, 0.044715
    %v695 = vmul.f32 %v631, 0.044715
    %v696 = vmul.f32 %v632, 0.044715
    %v697 = vmul.f32 %v633, 0.044715
    %v698 = vmul.f32 %v634, 0.044715
    %v699 = vmul.f32 %v635, 0.044715
    %v700 = vmul.f32 %v636, 0.044715
    %v701 = vmul.f32 %v637, 0.044715
    %v702 = vmul.f32 %v638, 0.044715
    %v703 = vmul.f32 %v639, 0.044715
    %v704 = vmul.f32 %v640, 0.044715
    %v705 = vmul.f32 %v641, 0.044715
    %v706 = vmul.f32 %v642, 0.044715
    %v707 = vmul.f32 %v643, 0.044715
    %v708 = vmul.f32 %v644, 0.044715
    %v709 = vmul.f32 %v645, 0.044715
    %v710 = vmul.f32 %v646, 0.044715
    %v711 = vmul.f32 %v647, 0.044715
    %v712 = vmul.f32 %v648, 0.044715
    %v713 = vmul.f32 %v649, 0.044715
    %v714 = vmul.f32 %v650, 0.044715
    %v715 = vmul.f32 %v651, 0.044715
    %v716 = vmul.f32 %v652, 0.044715
    %v717 = vmul.f32 %v653, 0.044715
    %v718 = vmul.f32 %v654, 0.044715
    %v719 = vmul.f32 %v655, 0.044715
    %v720 = vmul.f32 %v656, 0.044715
    %v721 = vmul.f32 %v657, 0.044715
    %v722 = vmul.f32 %v658, 0.044715
    %v723 = vmul.f32 %v659, 0.044715
    %v724 = vmul.f32 %v660, 0.044715
    %v725 = vmul.f32 %v661, 0.044715
    %v726 = vmul.f32 %v662, 0.044715
    %v727 = vmul.f32 %v663, 0.044715
    %v728 = vmul.f32 %v664, 0.044715
    %v729 = vmul.f32 %v665, 0.044715
    %v730 = vmul.f32 %v666, 0.044715
    %v731 = vmul.f32 %v667, 0.044715
    %v732 = vmul.f32 %v668, 0.044715
    %v733 = vmul.f32 %v669, 0.044715
    %v734 = vmul.f32 %v670, 0.044715
    %v735 = vmul.f32 %v671, 0.044715
    %v736 = vmul.f32 %v672, 0.044715
    %v737 = vmul.f32 %v673, 0.044715
    %v738 = vmul.f32 %v674, 0.044715
    %v739 = vadd.f32 %v675, 1.0
    %v740 = vadd.f32 %v676, 1.0
    %v741 = vadd.f32 %v677, 1.0
    %v742 = vadd.f32 %v678, 1.0
    %v743 = vadd.f32 %v679, 1.0
    %v744 = vadd.f32 %v680, 1.0
    %v745 = vadd.f32 %v681, 1.0
    %v746 = vadd.f32 %v682, 1.0
    %v747 = vadd.f32 %v683, 1.0
    %v748 = vadd.f32 %v684, 1.0
    %v749 = vadd.f32 %v685, 1.0
    %v750 = vadd.f32 %v686, 1.0
    %v751 = vadd.f32 %v687, 1.0
    %v752 = vadd.f32 %v688, 1.0
    %v753 = vadd.f32 %v689, 1.0
    %v754 = vadd.f32 %v690, 1.0
    %v755 = vadd.f32 %v691, 1.0
    %v756 = vadd.f32 %v692, 1.0
    %v757 = vadd.f32 %v693, 1.0
    %v758 = vadd.f32 %v694, 1.0
    %v759 = vadd.f32 %v695, 1.0
    %v760 = vadd.f32 %v696, 1.0
    %v761 = vadd.f32 %v697, 1.0
    %v762 = vadd.f32 %v698, 1.0
    %v763 = vadd.f32 %v699, 1.0
    %v764 = vadd.f32 %v700, 1.0
    %v765 = vadd.f32 %v701, 1.0
    %v766 = vadd.f32 %v702, 1.0
    %v767 = vadd.f32 %v703, 1.0
    %v768 = vadd.f32 %v704, 1.0
    %v769 = vadd.f32 %v705, 1.0
    %v770 = vadd.f32 %v706, 1.0
    %v771 = vadd.f32 %v707, 1.0
    %v772 = vadd.f32 %v708, 1.0
    %v773 = vadd.f32 %v709, 1.0
    %v774 = vadd.f32 %v710, 1.0
    %v775 = vadd.f32 %v711, 1.0
    %v776 = vadd.f32 %v712, 1.0
    %v777 = vadd.f32 %v713, 1.0
    %v778 = vadd.f32 %v714, 1.0
    %v779 = vadd.f32 %v715, 1.0
    %v780 = vadd.f32 %v716, 1.0
    %v781 = vadd.f32 %v717, 1.0
    %v782 = vadd.f32 %v718, 1.0
    %v783 = vadd.f32 %v719, 1.0
    %v784 = vadd.f32 %v720, 1.0
    %v785 = vadd.f32 %v721, 1.0
    %v786 = vadd.f32 %v722, 1.0
    %v787 = vadd.f32 %v723, 1.0
    %v788 = vadd.f32 %v724, 1.0
    %v789 = vadd.f32 %v725, 1.0
    %v790 = vadd.f32 %v726, 1.0
    %v791 = vadd.f32 %v727, 1.0
    %v792 = vadd.f32 %v728, 1.0
    %v793 = vadd.f32 %v729, 1.0
    %v794 = vadd.f32 %v730, 1.0
    %v795 = vadd.f32 %v731, 1.0
    %v796 = vadd.f32 %v732, 1.0
    %v797 = vadd.f32 %v733, 1.0
    %v798 = vadd.f32 %v734, 1.0
    %v799 = vadd.f32 %v735, 1.0
    %v800 = vadd.f32 %v736, 1.0
    %v801 = vadd.f32 %v737, 1.0
    %v802 = vadd.f32 %v738, 1.0
    %v803 = vmul.f32 %v547, %v739
    %v804 = vmul.f32 %v548, %v740
    %v805 = vmul.f32 %v549, %v741
    %v806 = vmul.f32 %v550, %v742
    %v807 = vmul.f32 %v551, %v743
    %v808 = vmul.f32 %v552, %v744
    %v809 = vmul.f32 %v553, %v745
    %v810 = vmul.f32 %v554, %v746
    %v811 = vmul.f32 %v555, %v747
    %v812 = vmul.f32 %v556, %v748
    %v813 = vmul.f32 %v557, %v749
    %v814 = vmul.f32 %v558, %v750
    %v815 = vmul.f32 %v559, %v751
    %v816 = vmul.f32 %v560, %v752
    %v817 = vmul.f32 %v561, %v753
    %v818 = vmul.f32 %v562, %v754
    %v819 = vmul.f32 %v563, %v755
    %v820 = vmul.f32 %v564, %v756
    %v821 = vmul.f32 %v565, %v757
    %v822 = vmul.f32 %v566, %v758
    %v823 = vmul.f32 %v567, %v759
    %v824 = vmul.f32 %v568, %v760
    %v825 = vmul.f32 %v569, %v761
    %v826 = vmul.f32 %v570, %v762
    %v827 = vmul.f32 %v571, %v763
    %v828 = vmul.f32 %v572, %v764
    %v829 = vmul.f32 %v573, %v765
    %v830 = vmul.f32 %v574, %v766
    %v831 = vmul.f32 %v575, %v767
    %v832 = vmul.f32 %v576, %v768
    %v833 = vmul.f32 %v577, %v769
    %v834 = vmul.f32 %v578, %v770
    %v835 = vmul.f32 %v579, %v771
    %v836 = vmul.f32 %v580, %v772
    %v837 = vmul.f32 %v581, %v773
    %v838 = vmul.f32 %v582, %v774
    %v839 = vmul.f32 %v583, %v775
    %v840 = vmul.f32 %v584, %v776
    %v841 = vmul.f32 %v585, %v777
    %v842 = vmul.f32 %v586, %v778
    %v843 = vmul.f32 %v587, %v779
    %v844 = vmul.f32 %v588, %v780
    %v845 = vmul.f32 %v589, %v781
    %v846 = vmul.f32 %v590, %v782
    %v847 = vmul.f32 %v591, %v783
    %v848 = vmul.f32 %v592, %v784
    %v849 = vmul.f32 %v593, %v785
    %v850 = vmul.f32 %v594, %v786
    %v851 = vmul.f32 %v595, %v787
    %v852 = vmul.f32 %v596, %v788
    %v853 = vmul.f32 %v597, %v789
    %v854 = vmul.f32 %v598, %v790
    %v855 = vmul.f32 %v599, %v791
    %v856 = vmul.f32 %v600, %v792
    %v857 = vmul.f32 %v601, %v793
    %v858 = vmul.f32 %v602, %v794
    %v859 = vmul.f32 %v603, %v795
    %v860 = vmul.f32 %v604, %v796
    %v861 = vmul.f32 %v605, %v797
    %v862 = vmul.f32 %v606, %v798
    %v863 = vmul.f32 %v607, %v799
    %v864 = vmul.f32 %v608, %v800
    %v865 = vmul.f32 %v609, %v801
    %v866 = vmul.f32 %v610, %v802
    %v867 = vmul.f32 %v356, 0.5
    %v868 = vmul.f32 %v358, 0.5
    %v869 = vmul.f32 %v469, 0.5
    %v870 = vmul.f32 %v471, 0.5
    %v871 = vmul.f32 %v360, 0.5
    %v872 = vmul.f32 %v362, 0.5
    %v873 = vmul.f32 %v473, 0.5
    %v874 = vmul.f32 %v475, 0.5
    %v875 = vmul.f32 %v366, 0.5
    %v876 = vmul.f32 %v368, 0.5
    %v877 = vmul.f32 %v479, 0.5
    %v878 = vmul.f32 %v481, 0.5
    %v879 = vmul.f32 %v370, 0.5
    %v880 = vmul.f32 %v372, 0.5
    %v881 = vmul.f32 %v483, 0.5
    %v882 = vmul.f32 %v485, 0.5
    %v883 = vmul.f32 %v376, 0.5
    %v884 = vmul.f32 %v378, 0.5
    %v885 = vmul.f32 %v489, 0.5
    %v886 = vmul.f32 %v491, 0.5
    %v887 = vmul.f32 %v380, 0.5
    %v888 = vmul.f32 %v382, 0.5
    %v889 = vmul.f32 %v493, 0.5
    %v890 = vmul.f32 %v495, 0.5
    %v891 = vmul.f32 %v386, 0.5
    %v892 = vmul.f32 %v388, 0.5
    %v893 = vmul.f32 %v499, 0.5
    %v894 = vmul.f32 %v501, 0.5
    %v895 = vmul.f32 %v390, 0.5
    %v896 = vmul.f32 %v392, 0.5
    %v897 = vmul.f32 %v503, 0.5
    %v898 = vmul.f32 %v505, 0.5
    %v899 = vmul.f32 %v396, 0.5
    %v900 = vmul.f32 %v398, 0.5
    %v901 = vmul.f32 %v509, 0.5
    %v902 = vmul.f32 %v511, 0.5
    %v903 = vmul.f32 %v400, 0.5
    %v904 = vmul.f32 %v402, 0.5
    %v905 = vmul.f32 %v513, 0.5
    %v906 = vmul.f32 %v515, 0.5
    %v907 = vmul.f32 %v406, 0.5
    %v908 = vmul.f32 %v408, 0.5
    %v909 = vmul.f32 %v519, 0.5
    %v910 = vmul.f32 %v521, 0.5
    %v911 = vmul.f32 %v410, 0.5
    %v912 = vmul.f32 %v412, 0.5
    %v913 = vmul.f32 %v523, 0.5
    %v914 = vmul.f32 %v525, 0.5
    %v915 = vmul.f32 %v416, 0.5
    %v916 = vmul.f32 %v418, 0.5
    %v917 = vmul.f32 %v529, 0.5
    %v918 = vmul.f32 %v531, 0.5
    %v919 = vmul.f32 %v420, 0.5
    %v920 = vmul.f32 %v422, 0.5
    %v921 = vmul.f32 %v533, 0.5
    %v922 = vmul.f32 %v535, 0.5
    %v923 = vmul.f32 %v426, 0.5
    %v924 = vmul.f32 %v428, 0.5
    %v925 = vmul.f32 %v539, 0.5
    %v926 = vmul.f32 %v541, 0.5
    %v927 = vmul.f32 %v430, 0.5
    %v928 = vmul.f32 %v432, 0.5
    %v929 = vmul.f32 %v543, 0.5
    %v930 = vmul.f32 %v545, 0.5
    %v931 = vtanh.pop %v803
    %v932 = vtanh.pop %v804
    %v933 = vtanh.pop %v805
    %v934 = vtanh.pop %v806
    %v935 = vtanh.pop %v807
    %v936 = vtanh.pop %v808
    %v937 = vtanh.pop %v809
    %v938 = vtanh.pop %v810
    %v939 = vtanh.pop %v811
    %v940 = vtanh.pop %v812
    %v941 = vtanh.pop %v813
    %v942 = vtanh.pop %v814
    %v943 = vtanh.pop %v815
    %v944 = vtanh.pop %v816
    %v945 = vtanh.pop %v817
    %v946 = vtanh.pop %v818
    %v947 = vtanh.pop %v819
    %v948 = vtanh.pop %v820
    %v949 = vtanh.pop %v821
    %v950 = vtanh.pop %v822
    %v951 = vtanh.pop %v823
    %v952 = vtanh.pop %v824
    %v953 = vtanh.pop %v825
    %v954 = vtanh.pop %v826
    %v955 = vtanh.pop %v827
    %v956 = vtanh.pop %v828
    %v957 = vtanh.pop %v829
    %v958 = vtanh.pop %v830
    %v959 = vtanh.pop %v831
    %v960 = vtanh.pop %v832
    %v961 = vtanh.pop %v833
    %v962 = vtanh.pop %v834
    %v963 = vtanh.pop %v835
    %v964 = vtanh.pop %v836
    %v965 = vtanh.pop %v837
    %v966 = vtanh.pop %v838
    %v967 = vtanh.pop %v839
    %v968 = vtanh.pop %v840
    %v969 = vtanh.pop %v841
    %v970 = vtanh.pop %v842
    %v971 = vtanh.pop %v843
    %v972 = vtanh.pop %v844
    %v973 = vtanh.pop %v845
    %v974 = vtanh.pop %v846
    %v975 = vtanh.pop %v847
    %v976 = vtanh.pop %v848
    %v977 = vtanh.pop %v849
    %v978 = vtanh.pop %v850
    %v979 = vtanh.pop %v851
    %v980 = vtanh.pop %v852
    %v981 = vtanh.pop %v853
    %v982 = vtanh.pop %v854
    %v983 = vtanh.pop %v855
    %v984 = vtanh.pop %v856
    %v985 = vtanh.pop %v857
    %v986 = vtanh.pop %v858
    %v987 = vtanh.pop %v859
    %v988 = vtanh.pop %v860
    %v989 = vtanh.pop %v861
    %v990 = vtanh.pop %v862
    %v991 = vtanh.pop %v863
    %v992 = vtanh.pop %v864
    %v993 = vtanh.pop %v865
    %v994 = vtanh.pop %v866
    %v995 = vadd.f32 %v931, 1.0
    %v996 = vadd.f32 %v932, 1.0
    %v997 = vadd.f32 %v933, 1.0
    %v998 = vadd.f32 %v934, 1.0
    %v999 = vadd.f32 %v935, 1.0
    %v1000 = vadd.f32 %v936, 1.0
    %v1001 = vadd.f32 %v937, 1.0
    %v1002 = vadd.f32 %v938, 1.0
    %v1003 = vadd.f32 %v939, 1.0
    %v1004 = vadd.f32 %v940, 1.0
    %v1005 = vadd.f32 %v941, 1.0
    %v1006 = vadd.f32 %v942, 1.0
    %v1007 = vadd.f32 %v943, 1.0
    %v1008 = vadd.f32 %v944, 1.0
    %v1009 = vadd.f32 %v945, 1.0
    %v1010 = vadd.f32 %v946, 1.0
    %v1011 = vadd.f32 %v947, 1.0
    %v1012 = vadd.f32 %v948, 1.0
    %v1013 = vadd.f32 %v949, 1.0
    %v1014 = vadd.f32 %v950, 1.0
    %v1015 = vadd.f32 %v951, 1.0
    %v1016 = vadd.f32 %v952, 1.0
    %v1017 = vadd.f32 %v953, 1.0
    %v1018 = vadd.f32 %v954, 1.0
    %v1019 = vadd.f32 %v955, 1.0
    %v1020 = vadd.f32 %v956, 1.0
    %v1021 = vadd.f32 %v957, 1.0
    %v1022 = vadd.f32 %v958, 1.0
    %v1023 = vadd.f32 %v959, 1.0
    %v1024 = vadd.f32 %v960, 1.0
    %v1025 = vadd.f32 %v961, 1.0
    %v1026 = vadd.f32 %v962, 1.0
    %v1027 = vadd.f32 %v963, 1.0
    %v1028 = vadd.f32 %v964, 1.0
    %v1029 = vadd.f32 %v965, 1.0
    %v1030 = vadd.f32 %v966, 1.0
    %v1031 = vadd.f32 %v967, 1.0
    %v1032 = vadd.f32 %v968, 1.0
    %v1033 = vadd.f32 %v969, 1.0
    %v1034 = vadd.f32 %v970, 1.0
    %v1035 = vadd.f32 %v971, 1.0
    %v1036 = vadd.f32 %v972, 1.0
    %v1037 = vadd.f32 %v973, 1.0
    %v1038 = vadd.f32 %v974, 1.0
    %v1039 = vadd.f32 %v975, 1.0
    %v1040 = vadd.f32 %v976, 1.0
    %v1041 = vadd.f32 %v977, 1.0
    %v1042 = vadd.f32 %v978, 1.0
    %v1043 = vadd.f32 %v979, 1.0
    %v1044 = vadd.f32 %v980, 1.0
    %v1045 = vadd.f32 %v981, 1.0
    %v1046 = vadd.f32 %v982, 1.0
    %v1047 = vadd.f32 %v983, 1.0
    %v1048 = vadd.f32 %v984, 1.0
    %v1049 = vadd.f32 %v985, 1.0
    %v1050 = vadd.f32 %v986, 1.0
    %v1051 = vadd.f32 %v987, 1.0
    %v1052 = vadd.f32 %v988, 1.0
    %v1053 = vadd.f32 %v989, 1.0
    %v1054 = vadd.f32 %v990, 1.0
    %v1055 = vadd.f32 %v991, 1.0
    %v1056 = vadd.f32 %v992, 1.0
    %v1057 = vadd.f32 %v993, 1.0
    %v1058 = vadd.f32 %v994, 1.0
    %v1059 = vmul.f32 %v867, %v995
    %v1060 = vmul.f32 %v868, %v996
    %v1061 = vmul.f32 %v869, %v997
    %v1062 = vmul.f32 %v870, %v998
    %v1063 = vmul.f32 %v871, %v999
    %v1064 = vmul.f32 %v872, %v1000
    %v1065 = vmul.f32 %v873, %v1001
    %v1066 = vmul.f32 %v874, %v1002
    %v1067 = vmul.f32 %v875, %v1003
    %v1068 = vmul.f32 %v876, %v1004
    %v1069 = vmul.f32 %v877, %v1005
    %v1070 = vmul.f32 %v878, %v1006
    %v1071 = vmul.f32 %v879, %v1007
    %v1072 = vmul.f32 %v880, %v1008
    %v1073 = vmul.f32 %v881, %v1009
    %v1074 = vmul.f32 %v882, %v1010
    %v1075 = vmul.f32 %v883, %v1011
    %v1076 = vmul.f32 %v884, %v1012
    %v1077 = vmul.f32 %v885, %v1013
    %v1078 = vmul.f32 %v886, %v1014
    %v1079 = vmul.f32 %v887, %v1015
    %v1080 = vmul.f32 %v888, %v1016
    %v1081 = vmul.f32 %v889, %v1017
    %v1082 = vmul.f32 %v890, %v1018
    %v1083 = vmul.f32 %v891, %v1019
    %v1084 = vmul.f32 %v892, %v1020
    %v1085 = vmul.f32 %v893, %v1021
    %v1086 = vmul.f32 %v894, %v1022
    %v1087 = vmul.f32 %v895, %v1023
    %v1088 = vmul.f32 %v896, %v1024
    %v1089 = vmul.f32 %v897, %v1025
    %v1090 = vmul.f32 %v898, %v1026
    %v1091 = vmul.f32 %v899, %v1027
    %v1092 = vmul.f32 %v900, %v1028
    %v1093 = vmul.f32 %v901, %v1029
    %v1094 = vmul.f32 %v902, %v1030
    %v1095 = vmul.f32 %v903, %v1031
    %v1096 = vmul.f32 %v904, %v1032
    %v1097 = vmul.f32 %v905, %v1033
    %v1098 = vmul.f32 %v906, %v1034
    %v1099 = vmul.f32 %v907, %v1035
    %v1100 = vmul.f32 %v908, %v1036
    %v1101 = vmul.f32 %v909, %v1037
    %v1102 = vmul.f32 %v910, %v1038
    %v1103 = vmul.f32 %v911, %v1039
    %v1104 = vmul.f32 %v912, %v1040
    %v1105 = vmul.f32 %v913, %v1041
    %v1106 = vmul.f32 %v914, %v1042
    %v1107 = vmul.f32 %v915, %v1043
    %v1108 = vmul.f32 %v916, %v1044
    %v1109 = vmul.f32 %v917, %v1045
    %v1110 = vmul.f32 %v918, %v1046
    %v1111 = vmul.f32 %v919, %v1047
    %v1112 = vmul.f32 %v920, %v1048
    %v1113 = vmul.f32 %v921, %v1049
    %v1114 = vmul.f32 %v922, %v1050
    %v1115 = vmul.f32 %v923, %v1051
    %v1116 = vmul.f32 %v924, %v1052
    %v1117 = vmul.f32 %v925, %v1053
    %v1118 = vmul.f32 %v926, %v1054
    %v1119 = vmul.f32 %v927, %v1055
    %v1120 = vmul.f32 %v928, %v1056
    %v1121 = vmul.f32 %v929, %v1057
    %v1122 = vmul.f32 %v930, %v1058
    %v1123 = vld [vmem:[#allocation8] sm:$0xf]
    %v1124 = vld [vmem:[#allocation8 + $0x4] sm:$0xf]
    %v1125 = vld [vmem:[#allocation8 + $0x8] sm:$0xf]
    %v1126 = vld [vmem:[#allocation8 + $0xc] sm:$0xf]
    %v1127 = vld [vmem:[#allocation8 + $0x10] sm:$0xf]
    %v1128 = vld [vmem:[#allocation8 + $0x14] sm:$0xf]
    %v1129 = vld [vmem:[#allocation8 + $0x18] sm:$0xf]
    %v1130 = vld [vmem:[#allocation8 + $0x1c] sm:$0xf]
    %v1131 = vld [vmem:[#allocation8 + $0x20] sm:$0xf]
    %v1132 = vld [vmem:[#allocation8 + $0x24] sm:$0xf]
    %v1133 = vld [vmem:[#allocation8 + $0x28] sm:$0xf]
    %v1134 = vld [vmem:[#allocation8 + $0x2c] sm:$0xf]
    %v1135 = vld [vmem:[#allocation8 + $0x30] sm:$0xf]
    %v1136 = vld [vmem:[#allocation8 + $0x34] sm:$0xf]
    %v1137 = vld [vmem:[#allocation8 + $0x38] sm:$0xf]
    %v1138 = vld [vmem:[#allocation8 + $0x3c] sm:$0xf]
    %v1139 = vld [vmem:[#allocation8 + $0x40] sm:$0xf]
    %v1140 = vld [vmem:[#allocation8 + $0x44] sm:$0xf]
    %v1141 = vld [vmem:[#allocation8 + $0x48] sm:$0xf]
    %v1142 = vld [vmem:[#allocation8 + $0x4c] sm:$0xf]
    %v1143 = vld [vmem:[#allocation8 + $0x50] sm:$0xf]
    %v1144 = vld [vmem:[#allocation8 + $0x54] sm:$0xf]
    %v1145 = vld [vmem:[#allocation8 + $0x58] sm:$0xf]
    %v1146 = vld [vmem:[#allocation8 + $0x5c] sm:$0xf]
    %v1147 = vld [vmem:[#allocation8 + $0x60] sm:$0xf]
    %v1148 = vld [vmem:[#allocation8 + $0x64] sm:$0xf]
    %v1149 = vld [vmem:[#allocation8 + $0x68] sm:$0xf]
    %v1150 = vld [vmem:[#allocation8 + $0x6c] sm:$0xf]
    %v1151 = vld [vmem:[#allocation8 + $0x70] sm:$0xf]
    %v1152 = vld [vmem:[#allocation8 + $0x74] sm:$0xf]
    %v1153 = vld [vmem:[#allocation8 + $0x78] sm:$0xf]
    %v1154 = vld [vmem:[#allocation8 + $0x7c] sm:$0xf]
    %v1155 = vld [vmem:[#allocation8 + $0x80] sm:$0xf]
    %v1156 = vld [vmem:[#allocation8 + $0x84] sm:$0xf]
    %v1157 = vld [vmem:[#allocation8 + $0x88] sm:$0xf]
    %v1158 = vld [vmem:[#allocation8 + $0x8c] sm:$0xf]
    %v1159 = vld [vmem:[#allocation8 + $0x90] sm:$0xf]
    %v1160 = vld [vmem:[#allocation8 + $0x94] sm:$0xf]
    %v1161 = vld [vmem:[#allocation8 + $0x98] sm:$0xf]
    %v1162 = vld [vmem:[#allocation8 + $0x9c] sm:$0xf]
    %v1163 = vld [vmem:[#allocation8 + $0xa0] sm:$0xf]
    %v1164 = vld [vmem:[#allocation8 + $0xa4] sm:$0xf]
    %v1165 = vld [vmem:[#allocation8 + $0xa8] sm:$0xf]
    %v1166 = vld [vmem:[#allocation8 + $0xac] sm:$0xf]
    %v1167 = vld [vmem:[#allocation8 + $0xb0] sm:$0xf]
    %v1168 = vld [vmem:[#allocation8 + $0xb4] sm:$0xf]
    %v1169 = vld [vmem:[#allocation8 + $0xb8] sm:$0xf]
    %v1170 = vld [vmem:[#allocation8 + $0xbc] sm:$0xf]
    %v1171 = vld [vmem:[#allocation8 + $0xc0] sm:$0xf]
    %v1172 = vld [vmem:[#allocation8 + $0xc4] sm:$0xf]
    %v1173 = vld [vmem:[#allocation8 + $0xc8] sm:$0xf]
    %v1174 = vld [vmem:[#allocation8 + $0xcc] sm:$0xf]
    %v1175 = vld [vmem:[#allocation8 + $0xd0] sm:$0xf]
    %v1176 = vld [vmem:[#allocation8 + $0xd4] sm:$0xf]
    %v1177 = vld [vmem:[#allocation8 + $0xd8] sm:$0xf]
    %v1178 = vld [vmem:[#allocation8 + $0xdc] sm:$0xf]
    %v1179 = vld [vmem:[#allocation8 + $0xe0] sm:$0xf]
    %v1180 = vld [vmem:[#allocation8 + $0xe4] sm:$0xf]
    %v1181 = vld [vmem:[#allocation8 + $0xe8] sm:$0xf]
    %v1182 = vld [vmem:[#allocation8 + $0xec] sm:$0xf]
    %v1183 = vld [vmem:[#allocation8 + $0xf0] sm:$0xf]
    %v1184 = vld [vmem:[#allocation8 + $0xf4] sm:$0xf]
    %v1185 = vld [vmem:[#allocation8 + $0xf8] sm:$0xf]
    %v1186 = vld [vmem:[#allocation8 + $0xfc] sm:$0xf]
    %v1187 = vld [vmem:[#allocation2] sm:$0xff]
    %v1188 = vld [vmem:[#allocation2 + $0x8] sm:$0xff]
    %v1189 = vld [vmem:[#allocation2 + $0x10] sm:$0xff]
    %v1190 = vld [vmem:[#allocation2 + $0x18] sm:$0xff]
    %v1191 = vld [vmem:[#allocation2 + $0x20] sm:$0xff]
    %v1192 = vld [vmem:[#allocation2 + $0x28] sm:$0xff]
    %v1193 = vld [vmem:[#allocation2 + $0x30] sm:$0xff]
    %v1194 = vld [vmem:[#allocation2 + $0x38] sm:$0xff]
    %v1195 = vld [vmem:[#allocation2 + $0x40] sm:$0xff]
    %v1196 = vld [vmem:[#allocation2 + $0x48] sm:$0xff]
    %v1197 = vld [vmem:[#allocation2 + $0x50] sm:$0xff]
    %v1198 = vld [vmem:[#allocation2 + $0x58] sm:$0xff]
    %v1199 = vld [vmem:[#allocation2 + $0x60] sm:$0xff]
    %v1200 = vld [vmem:[#allocation2 + $0x68] sm:$0xff]
    %v1201 = vld [vmem:[#allocation2 + $0x70] sm:$0xff]
    %v1202 = vld [vmem:[#allocation2 + $0x78] sm:$0xff]
    %v1203 = vpack.c.bf16 %v1063, %v1059
    %v1204 = vpack.c.bf16 %v1064, %v1060
    %v1205 = vpack.c.bf16 %v1065, %v1061
    %v1206 = vpack.c.bf16 %v1066, %v1062
    %v1207 = vpack.c.bf16 %v1071, %v1067
    %v1208 = vpack.c.bf16 %v1072, %v1068
    %v1209 = vpack.c.bf16 %v1073, %v1069
    %v1210 = vpack.c.bf16 %v1074, %v1070
    %v1211 = vpack.c.bf16 %v1079, %v1075
    %v1212 = vpack.c.bf16 %v1080, %v1076
    %v1213 = vpack.c.bf16 %v1081, %v1077
    %v1214 = vpack.c.bf16 %v1082, %v1078
    %v1215 = vpack.c.bf16 %v1087, %v1083
    %v1216 = vpack.c.bf16 %v1088, %v1084
    %v1217 = vpack.c.bf16 %v1089, %v1085
    %v1218 = vpack.c.bf16 %v1090, %v1086
    %v1219 = vpack.c.bf16 %v1095, %v1091
    %v1220 = vpack.c.bf16 %v1096, %v1092
    %v1221 = vpack.c.bf16 %v1097, %v1093
    %v1222 = vpack.c.bf16 %v1098, %v1094
    %v1223 = vpack.c.bf16 %v1103, %v1099
    %v1224 = vpack.c.bf16 %v1104, %v1100
    %v1225 = vpack.c.bf16 %v1105, %v1101
    %v1226 = vpack.c.bf16 %v1106, %v1102
    %v1227 = vpack.c.bf16 %v1111, %v1107
    %v1228 = vpack.c.bf16 %v1112, %v1108
    %v1229 = vpack.c.bf16 %v1113, %v1109
    %v1230 = vpack.c.bf16 %v1114, %v1110
    %v1231 = vpack.c.bf16 %v1119, %v1115
    %v1232 = vpack.c.bf16 %v1120, %v1116
    %v1233 = vpack.c.bf16 %v1121, %v1117
    %v1234 = vpack.c.bf16 %v1122, %v1118
    %v1299 = vunpack.c.l.b16 %v1123
    %v1300 = vunpack.c.l.b16 %v1124
    %v1301 = vunpack.c.l.b16 %v1125
    %v1302 = vunpack.c.l.b16 %v1126
    %v1303 = vunpack.c.l.b16 %v1127
    %v1304 = vunpack.c.l.b16 %v1128
    %v1305 = vunpack.c.l.b16 %v1129
    %v1306 = vunpack.c.l.b16 %v1130
    %v1307 = vunpack.c.l.b16 %v1131
    %v1308 = vunpack.c.l.b16 %v1132
    %v1309 = vunpack.c.l.b16 %v1133
    %v1310 = vunpack.c.l.b16 %v1134
    %v1311 = vunpack.c.l.b16 %v1135
    %v1312 = vunpack.c.l.b16 %v1136
    %v1313 = vunpack.c.l.b16 %v1137
    %v1314 = vunpack.c.l.b16 %v1138
    %v1315 = vunpack.c.l.b16 %v1139
    %v1316 = vunpack.c.l.b16 %v1140
    %v1317 = vunpack.c.l.b16 %v1141
    %v1318 = vunpack.c.l.b16 %v1142
    %v1319 = vunpack.c.l.b16 %v1143
    %v1320 = vunpack.c.l.b16 %v1144
    %v1321 = vunpack.c.l.b16 %v1145
    %v1322 = vunpack.c.l.b16 %v1146
    %v1323 = vunpack.c.l.b16 %v1147
    %v1324 = vunpack.c.l.b16 %v1148
    %v1325 = vunpack.c.l.b16 %v1149
    %v1326 = vunpack.c.l.b16 %v1150
    %v1327 = vunpack.c.l.b16 %v1151
    %v1328 = vunpack.c.l.b16 %v1152
    %v1329 = vunpack.c.l.b16 %v1153
    %v1330 = vunpack.c.l.b16 %v1154
    %v1331 = vunpack.c.l.b16 %v1155
    %v1332 = vunpack.c.l.b16 %v1156
    %v1333 = vunpack.c.l.b16 %v1157
    %v1334 = vunpack.c.l.b16 %v1158
    %v1335 = vunpack.c.l.b16 %v1159
    %v1336 = vunpack.c.l.b16 %v1160
    %v1337 = vunpack.c.l.b16 %v1161
    %v1338 = vunpack.c.l.b16 %v1162
    %v1339 = vunpack.c.l.b16 %v1163
    %v1340 = vunpack.c.l.b16 %v1164
    %v1341 = vunpack.c.l.b16 %v1165
    %v1342 = vunpack.c.l.b16 %v1166
    %v1343 = vunpack.c.l.b16 %v1167
    %v1344 = vunpack.c.l.b16 %v1168
    %v1345 = vunpack.c.l.b16 %v1169
    %v1346 = vunpack.c.l.b16 %v1170
    %v1347 = vunpack.c.l.b16 %v1171
    %v1348 = vunpack.c.l.b16 %v1172
    %v1349 = vunpack.c.l.b16 %v1173
    %v1350 = vunpack.c.l.b16 %v1174
    %v1351 = vunpack.c.l.b16 %v1175
    %v1352 = vunpack.c.l.b16 %v1176
    %v1353 = vunpack.c.l.b16 %v1177
    %v1354 = vunpack.c.l.b16 %v1178
    %v1355 = vunpack.c.l.b16 %v1179
    %v1356 = vunpack.c.l.b16 %v1180
    %v1357 = vunpack.c.l.b16 %v1181
    %v1358 = vunpack.c.l.b16 %v1182
    %v1359 = vunpack.c.l.b16 %v1183
    %v1360 = vunpack.c.l.b16 %v1184
    %v1361 = vunpack.c.l.b16 %v1185
    %v1362 = vunpack.c.l.b16 %v1186
    %v1363 = vpack.c.b16 %v1300, %v1299
    %v1364 = vpack.c.b16 %v1302, %v1301
    %v1365 = vpack.c.b16 %v1304, %v1303
    %v1366 = vpack.c.b16 %v1306, %v1305
    %v1367 = vpack.c.b16 %v1308, %v1307
    %v1368 = vpack.c.b16 %v1310, %v1309
    %v1369 = vpack.c.b16 %v1312, %v1311
    %v1370 = vpack.c.b16 %v1314, %v1313
    %v1371 = vpack.c.b16 %v1316, %v1315
    %v1372 = vpack.c.b16 %v1318, %v1317
    %v1373 = vpack.c.b16 %v1320, %v1319
    %v1374 = vpack.c.b16 %v1322, %v1321
    %v1375 = vpack.c.b16 %v1324, %v1323
    %v1376 = vpack.c.b16 %v1326, %v1325
    %v1377 = vpack.c.b16 %v1328, %v1327
    %v1378 = vpack.c.b16 %v1330, %v1329
    %v1379 = vpack.c.b16 %v1332, %v1331
    %v1380 = vpack.c.b16 %v1334, %v1333
    %v1381 = vpack.c.b16 %v1336, %v1335
    %v1382 = vpack.c.b16 %v1338, %v1337
    %v1383 = vpack.c.b16 %v1340, %v1339
    %v1384 = vpack.c.b16 %v1342, %v1341
    %v1385 = vpack.c.b16 %v1344, %v1343
    %v1386 = vpack.c.b16 %v1346, %v1345
    %v1387 = vpack.c.b16 %v1348, %v1347
    %v1388 = vpack.c.b16 %v1350, %v1349
    %v1389 = vpack.c.b16 %v1352, %v1351
    %v1390 = vpack.c.b16 %v1354, %v1353
    %v1391 = vpack.c.b16 %v1356, %v1355
    %v1392 = vpack.c.b16 %v1358, %v1357
    %v1393 = vpack.c.b16 %v1360, %v1359
    %v1394 = vpack.c.b16 %v1362, %v1361
    %1427 = vmatprep.subr.bf16.mxu0 0
    %1428 = vmatpush1.bf16.msra.mxu0 %v1363
    %1429 = vmatprep.subr.bf16.mxu0 0
    %1430 = vmatpush1.bf16.msra.mxu0 %v1364
    %1431 = vmatprep.subr.bf16.mxu0 0
    %1432 = vmatpush1.bf16.msra.mxu0 %v1365
    %1433 = vmatprep.subr.bf16.mxu0 0
    %1434 = vmatpush1.bf16.msra.mxu0 %v1366
    %1435 = vmatprep.subr.bf16.mxu0 0
    %1436 = vmatpush1.bf16.msra.mxu0 %v1367
    %1437 = vmatprep.subr.bf16.mxu0 0
    %1438 = vmatpush1.bf16.msra.mxu0 %v1368
    %1439 = vmatprep.subr.bf16.mxu0 0
    %1440 = vmatpush1.bf16.msra.mxu0 %v1369
    %1441 = vmatprep.subr.bf16.mxu0 0
    %1442 = vmatpush1.bf16.msra.mxu0 %v1370
    %1443 = vmatprep.subr.bf16.mxu0 0
    %1444 = vmatpush1.bf16.msra.mxu0 %v1371
    %1445 = vmatprep.subr.bf16.mxu0 0
    %1446 = vmatpush1.bf16.msra.mxu0 %v1372
    %1447 = vmatprep.subr.bf16.mxu0 0
    %1448 = vmatpush1.bf16.msra.mxu0 %v1373
    %1449 = vmatprep.subr.bf16.mxu0 0
    %1450 = vmatpush1.bf16.msra.mxu0 %v1374
    %1451 = vmatprep.subr.bf16.mxu0 0
    %1452 = vmatpush1.bf16.msra.mxu0 %v1375
    %1453 = vmatprep.subr.bf16.mxu0 0
    %1454 = vmatpush1.bf16.msra.mxu0 %v1376
    %1455 = vmatprep.subr.bf16.mxu0 0
    %1456 = vmatpush1.bf16.msra.mxu0 %v1377
    %1457 = vmatprep.subr.bf16.mxu0 0
    %1458 = vmatpush1.bf16.msra.mxu0 %v1378
    %1459 = vmatprep.mubr.bf16.mxu0 %v1204
    %1460 = vmatmul.mubr.bf16.gmra.mrb[0].mxu0 %v1203
    %v1461 = vpop.f32.mrb[0].mxu0
    %v1462 = vadd.f32 0.0, %v1461
    %v1463 = vpop.f32.mrb[0].mxu0
    %v1464 = vpop.f32.mrb[0].mxu0
    %v1465 = vadd.f32 0.0, %v1464
    %v1466 = vpop.f32.mrb[0].mxu0
    %1467 = vmatprep.mubr.bf16.mxu0 %v1208
    %1468 = vmatmul.mubr.bf16.gmra.mrb[0].mxu0 %v1207
    %v1469 = vpop.f32.mrb[0].mxu0
    %v1470 = vadd.f32 0.0, %v1469
    %v1471 = vpop.f32.mrb[0].mxu0
    %v1472 = vpop.f32.mrb[0].mxu0
    %v1473 = vadd.f32 0.0, %v1472
    %v1474 = vpop.f32.mrb[0].mxu0
    %1475 = vmatprep.mubr.bf16.mxu0 %v1212
    %1476 = vmatmul.mubr.bf16.gmra.mrb[0].mxu0 %v1211
    %v1477 = vpop.f32.mrb[0].mxu0
    %v1478 = vadd.f32 0.0, %v1477
    %v1479 = vpop.f32.mrb[0].mxu0
    %v1480 = vpop.f32.mrb[0].mxu0
    %v1481 = vadd.f32 0.0, %v1480
    %v1482 = vpop.f32.mrb[0].mxu0
    %1483 = vmatprep.mubr.bf16.mxu0 %v1216
    %1484 = vmatmul.mubr.bf16.gmra.mrb[0].mxu0 %v1215
    %v1485 = vpop.f32.mrb[0].mxu0
    %v1486 = vadd.f32 0.0, %v1485
    %v1487 = vpop.f32.mrb[0].mxu0
    %v1488 = vpop.f32.mrb[0].mxu0
    %v1489 = vadd.f32 0.0, %v1488
    %v1490 = vpop.f32.mrb[0].mxu0
    %1491 = vmatprep.mubr.bf16.mxu0 %v1220
    %1492 = vmatmul.mubr.bf16.gmra.mrb[0].mxu0 %v1219
    %v1493 = vpop.f32.mrb[0].mxu0
    %v1494 = vadd.f32 0.0, %v1493
    %v1495 = vpop.f32.mrb[0].mxu0
    %v1496 = vpop.f32.mrb[0].mxu0
    %v1497 = vadd.f32 0.0, %v1496
    %v1498 = vpop.f32.mrb[0].mxu0
    %1499 = vmatprep.mubr.bf16.mxu0 %v1224
    %1500 = vmatmul.mubr.bf16.gmra.mrb[0].mxu0 %v1223
    %v1501 = vpop.f32.mrb[0].mxu0
    %v1502 = vadd.f32 0.0, %v1501
    %v1503 = vpop.f32.mrb[0].mxu0
    %v1504 = vpop.f32.mrb[0].mxu0
    %v1505 = vadd.f32 0.0, %v1504
    %v1506 = vpop.f32.mrb[0].mxu0
    %1507 = vmatprep.mubr.bf16.mxu0 %v1228
    %1508 = vmatmul.mubr.bf16.gmra.mrb[0].mxu0 %v1227
    %v1509 = vpop.f32.mrb[0].mxu0
    %v1510 = vadd.f32 0.0, %v1509
    %v1511 = vpop.f32.mrb[0].mxu0
    %v1512 = vpop.f32.mrb[0].mxu0
    %v1513 = vadd.f32 0.0, %v1512
    %v1514 = vpop.f32.mrb[0].mxu0
    %1515 = vmatprep.mubr.bf16.mxu0 %v1232
    %1516 = vmatmul.mubr.bf16.gmra.mrb[0].mxu0 %v1231
    %v1517 = vpop.f32.mrb[0].mxu0
    %v1518 = vadd.f32 0.0, %v1517
    %v1519 = vpop.f32.mrb[0].mxu0
    %v1520 = vpop.f32.mrb[0].mxu0
    %v1521 = vadd.f32 0.0, %v1520
    %v1522 = vpop.f32.mrb[0].mxu0
    %1523 = vdwg.mxu0
    %1524 = vmatprep.subr.bf16.mxu0 0
    %1525 = vmatpush1.bf16.msra.mxu0 %v1379
    %1526 = vmatprep.subr.bf16.mxu0 0
    %1527 = vmatpush1.bf16.msra.mxu0 %v1380
    %1528 = vmatprep.subr.bf16.mxu0 0
    %1529 = vmatpush1.bf16.msra.mxu0 %v1381
    %1530 = vmatprep.subr.bf16.mxu0 0
    %1531 = vmatpush1.bf16.msra.mxu0 %v1382
    %1532 = vmatprep.subr.bf16.mxu0 0
    %1533 = vmatpush1.bf16.msra.mxu0 %v1383
    %1534 = vmatprep.subr.bf16.mxu0 0
    %1535 = vmatpush1.bf16.msra.mxu0 %v1384
    %1536 = vmatprep.subr.bf16.mxu0 0
    %1537 = vmatpush1.bf16.msra.mxu0 %v1385
    %1538 = vmatprep.subr.bf16.mxu0 0
    %1539 = vmatpush1.bf16.msra.mxu0 %v1386
    %1540 = vmatprep.subr.bf16.mxu0 0
    %1541 = vmatpush1.bf16.msra.mxu0 %v1387
    %1542 = vmatprep.subr.bf16.mxu0 0
    %1543 = vmatpush1.bf16.msra.mxu0 %v1388
    %1544 = vmatprep.subr.bf16.mxu0 0
    %1545 = vmatpush1.bf16.msra.mxu0 %v1389
    %1546 = vmatprep.subr.bf16.mxu0 0
    %1547 = vmatpush1.bf16.msra.mxu0 %v1390
    %1548 = vmatprep.subr.bf16.mxu0 0
    %1549 = vmatpush1.bf16.msra.mxu0 %v1391
    %1550 = vmatprep.subr.bf16.mxu0 0
    %1551 = vmatpush1.bf16.msra.mxu0 %v1392
    %1552 = vmatprep.subr.bf16.mxu0 0
    %1553 = vmatpush1.bf16.msra.mxu0 %v1393
    %1554 = vmatprep.subr.bf16.mxu0 0
    %1555 = vmatpush1.bf16.msra.mxu0 %v1394
    %1556 = vmatprep.mubr.bf16.mxu0 %v1206
    %1557 = vmatmul.mubr.bf16.gmra.mrb[0].mxu0 %v1205
    %v1558 = vpop.f32.mrb[0].mxu0
    %v1559 = vadd.f32 %v1462, %v1558
    %v1560 = vpop.f32.mrb[0].mxu0
    %v1561 = vpop.f32.mrb[0].mxu0
    %v1562 = vadd.f32 %v1465, %v1561
    %v1563 = vpop.f32.mrb[0].mxu0
    %1564 = vmatprep.mubr.bf16.mxu0 %v1210
    %1565 = vmatmul.mubr.bf16.gmra.mrb[0].mxu0 %v1209
    %v1566 = vpop.f32.mrb[0].mxu0
    %v1567 = vadd.f32 %v1470, %v1566
    %v1568 = vpop.f32.mrb[0].mxu0
    %v1569 = vpop.f32.mrb[0].mxu0
    %v1570 = vadd.f32 %v1473, %v1569
    %v1571 = vpop.f32.mrb[0].mxu0
    %1572 = vmatprep.mubr.bf16.mxu0 %v1214
    %1573 = vmatmul.mubr.bf16.gmra.mrb[0].mxu0 %v1213
    %v1574 = vpop.f32.mrb[0].mxu0
    %v1575 = vadd.f32 %v1478, %v1574
    %v1576 = vpop.f32.mrb[0].mxu0
    %v1577 = vpop.f32.mrb[0].mxu0
    %v1578 = vadd.f32 %v1481, %v1577
    %v1579 = vpop.f32.mrb[0].mxu0
    %1580 = vmatprep.mubr.bf16.mxu0 %v1218
    %1581 = vmatmul.mubr.bf16.gmra.mrb[0].mxu0 %v1217
    %v1582 = vpop.f32.mrb[0].mxu0
    %v1583 = vadd.f32 %v1486, %v1582
    %v1584 = vpop.f32.mrb[0].mxu0
    %v1585 = vpop.f32.mrb[0].mxu0
    %v1586 = vadd.f32 %v1489, %v1585
    %v1587 = vpop.f32.mrb[0].mxu0
    %1588 = vmatprep.mubr.bf16.mxu0 %v1222
    %1589 = vmatmul.mubr.bf16.gmra.mrb[0].mxu0 %v1221
    %v1590 = vpop.f32.mrb[0].mxu0
    %v1591 = vadd.f32 %v1494, %v1590
    %v1592 = vpop.f32.mrb[0].mxu0
    %v1593 = vpop.f32.mrb[0].mxu0
    %v1594 = vadd.f32 %v1497, %v1593
    %v1595 = vpop.f32.mrb[0].mxu0
    %1596 = vmatprep.mubr.bf16.mxu0 %v1226
    %1597 = vmatmul.mubr.bf16.gmra.mrb[0].mxu0 %v1225
    %v1598 = vpop.f32.mrb[0].mxu0
    %v1599 = vadd.f32 %v1502, %v1598
    %v1600 = vpop.f32.mrb[0].mxu0
    %v1601 = vpop.f32.mrb[0].mxu0
    %v1602 = vadd.f32 %v1505, %v1601
    %v1603 = vpop.f32.mrb[0].mxu0
    %1604 = vmatprep.mubr.bf16.mxu0 %v1230
    %1605 = vmatmul.mubr.bf16.gmra.mrb[0].mxu0 %v1229
    %v1606 = vpop.f32.mrb[0].mxu0
    %v1607 = vadd.f32 %v1510, %v1606
    %v1608 = vpop.f32.mrb[0].mxu0
    %v1609 = vpop.f32.mrb[0].mxu0
    %v1610 = vadd.f32 %v1513, %v1609
    %v1611 = vpop.f32.mrb[0].mxu0
    %1612 = vmatprep.mubr.bf16.mxu0 %v1234
    %1613 = vmatmul.mubr.bf16.gmra.mrb[0].mxu0 %v1233
    %v1614 = vpop.f32.mrb[0].mxu0
    %v1615 = vadd.f32 %v1518, %v1614
    %v1616 = vpop.f32.mrb[0].mxu0
    %v1617 = vpop.f32.mrb[0].mxu0
    %v1618 = vadd.f32 %v1521, %v1617
    %v1619 = vpop.f32.mrb[0].mxu0
    %1620 = vdwg.mxu0
    %v1621 = vadd.f32 %v1187, %v1559
    %v1622 = vadd.f32 %v1188, %v1562
    %v1623 = vadd.f32 %v1189, %v1567
    %v1624 = vadd.f32 %v1190, %v1570
    %v1625 = vadd.f32 %v1191, %v1575
    %v1626 = vadd.f32 %v1192, %v1578
    %v1627 = vadd.f32 %v1193, %v1583
    %v1628 = vadd.f32 %v1194, %v1586
    %v1629 = vadd.f32 %v1195, %v1591
    %v1630 = vadd.f32 %v1196, %v1594
    %v1631 = vadd.f32 %v1197, %v1599
    %v1632 = vadd.f32 %v1198, %v1602
    %v1633 = vadd.f32 %v1199, %v1607
    %v1634 = vadd.f32 %v1200, %v1610
    %v1635 = vadd.f32 %v1201, %v1615
    %v1636 = vadd.f32 %v1202, %v1618
    %1637 = vst [vmem:[#allocation2] sm:$0xff] %v1621
    %1638 = vst [vmem:[#allocation2 + $0x8] sm:$0xff] %v1622
    %1639 = vst [vmem:[#allocation2 + $0x10] sm:$0xff] %v1623
    %1640 = vst [vmem:[#allocation2 + $0x18] sm:$0xff] %v1624
    %1641 = vst [vmem:[#allocation2 + $0x20] sm:$0xff] %v1625
    %1642 = vst [vmem:[#allocation2 + $0x28] sm:$0xff] %v1626
    %1643 = vst [vmem:[#allocation2 + $0x30] sm:$0xff] %v1627
    %1644 = vst [vmem:[#allocation2 + $0x38] sm:$0xff] %v1628
    %1645 = vst [vmem:[#allocation2 + $0x40] sm:$0xff] %v1629
    %1646 = vst [vmem:[#allocation2 + $0x48] sm:$0xff] %v1630
    %1647 = vst [vmem:[#allocation2 + $0x50] sm:$0xff] %v1631
    %1648 = vst [vmem:[#allocation2 + $0x58] sm:$0xff] %v1632
    %1649 = vst [vmem:[#allocation2 + $0x60] sm:$0xff] %v1633
    %1650 = vst [vmem:[#allocation2 + $0x68] sm:$0xff] %v1634
    %1651 = vst [vmem:[#allocation2 + $0x70] sm:$0xff] %v1635
    %1652 = vst [vmem:[#allocation2 + $0x78] sm:$0xff] %v1636
    // Predicated region
    $region38: #{tpu_custom_call.1} parent=1 // pred_check
      %p1653 = pneg %p63
    $region39: #{tpu_custom_call.1} parent=1 // pred_check_branch
      %1655 = sbr.rel (%p1653) target = $region41
    $region40: #{tpu_custom_call.1} parent=1 // pred_region
      %v1656 = vld [vmem:[#allocation2] sm:$0xff]
      %v1657 = vld [vmem:[#allocation2 + $0x8] sm:$0xff]
      %v1658 = vld [vmem:[#allocation2 + $0x10] sm:$0xff]
      %v1659 = vld [vmem:[#allocation2 + $0x18] sm:$0xff]
      %v1660 = vld [vmem:[#allocation2 + $0x20] sm:$0xff]
      %v1661 = vld [vmem:[#allocation2 + $0x28] sm:$0xff]
      %v1662 = vld [vmem:[#allocation2 + $0x30] sm:$0xff]
      %v1663 = vld [vmem:[#allocation2 + $0x38] sm:$0xff]
      %v1664 = vld [vmem:[#allocation2 + $0x40] sm:$0xff]
      %v1665 = vld [vmem:[#allocation2 + $0x48] sm:$0xff]
      %v1666 = vld [vmem:[#allocation2 + $0x50] sm:$0xff]
      %v1667 = vld [vmem:[#allocation2 + $0x58] sm:$0xff]
      %v1668 = vld [vmem:[#allocation2 + $0x60] sm:$0xff]
      %v1669 = vld [vmem:[#allocation2 + $0x68] sm:$0xff]
      %v1670 = vld [vmem:[#allocation2 + $0x70] sm:$0xff]
      %v1671 = vld [vmem:[#allocation2 + $0x78] sm:$0xff]
      %v1672 = vld [vmem:[%s4] sm:$0x1]
      %v1674 = vlaneseq
      %v1675 = vshrl.u32 %v1674, 7
      %v1676 = vsub.s32 0, %v1675
      %v1677 = vrot.slane %v1672, %v1676
      %v1679 = vadd.f32 %v1656, %v1677
      %v1680 = vadd.f32 %v1657, %v1677
      %v1681 = vadd.f32 %v1658, %v1677
      %v1682 = vadd.f32 %v1659, %v1677
      %v1683 = vadd.f32 %v1660, %v1677
      %v1684 = vadd.f32 %v1661, %v1677
      %v1685 = vadd.f32 %v1662, %v1677
      %v1686 = vadd.f32 %v1663, %v1677
      %v1687 = vadd.f32 %v1664, %v1677
      %v1688 = vadd.f32 %v1665, %v1677
      %v1689 = vadd.f32 %v1666, %v1677
      %v1690 = vadd.f32 %v1667, %v1677
      %v1691 = vadd.f32 %v1668, %v1677
      %v1692 = vadd.f32 %v1669, %v1677
      %v1693 = vadd.f32 %v1670, %v1677
      %v1694 = vadd.f32 %v1671, %v1677
      %1695 = vst [vmem:[#allocation9] sm:$0xff] %v1679
      %1696 = vst [vmem:[#allocation9 + $0x8] sm:$0xff] %v1680
      %1697 = vst [vmem:[#allocation9 + $0x10] sm:$0xff] %v1681
      %1698 = vst [vmem:[#allocation9 + $0x18] sm:$0xff] %v1682
      %1699 = vst [vmem:[#allocation9 + $0x20] sm:$0xff] %v1683
      %1700 = vst [vmem:[#allocation9 + $0x28] sm:$0xff] %v1684
      %1701 = vst [vmem:[#allocation9 + $0x30] sm:$0xff] %v1685
      %1702 = vst [vmem:[#allocation9 + $0x38] sm:$0xff] %v1686
      %1703 = vst [vmem:[#allocation9 + $0x40] sm:$0xff] %v1687
      %1704 = vst [vmem:[#allocation9 + $0x48] sm:$0xff] %v1688
      %1705 = vst [vmem:[#allocation9 + $0x50] sm:$0xff] %v1689
      %1706 = vst [vmem:[#allocation9 + $0x58] sm:$0xff] %v1690
      %1707 = vst [vmem:[#allocation9 + $0x60] sm:$0xff] %v1691
      %1708 = vst [vmem:[#allocation9 + $0x68] sm:$0xff] %v1692
      %1709 = vst [vmem:[#allocation9 + $0x70] sm:$0xff] %v1693
      %1710 = vst [vmem:[#allocation9 + $0x78] sm:$0xff] %v1694
    $region41: #{tpu_custom_call.1} parent=1 // pred_fallthru
      _
    // Predicated region
    $region42: #{tpu_custom_call.1} parent=1 // pred_check
      _
    $region43: #{tpu_custom_call.1} parent=1 // pred_check_branch
      %1712 = sbr.rel (0) target = $region45
    $region44: #{tpu_custom_call.1} parent=1 // pred_region
      %s1714 = ssub.s32 2048, 2048
      %1715 = vsyncadd [#allocation5], %s1714
      %s1716 = sshll.u32 [#allocation9], 4
      %s1717 = int_to_ptr.vmem [resolvable:$true] %s1716
      %1722 = dma.vmem_to_hbm [thread:$0]  %s1717, 2048, %s5, [#allocation5], 128, 128, 8
    $region45: #{tpu_custom_call.1} parent=1 // pred_fallthru
      _
    // Predicated region
    $region46: #{tpu_custom_call.1} parent=1 // pred_check
      _
    $region47: #{tpu_custom_call.1} parent=1 // pred_check_branch
      %1724 = sbr.rel (0) target = $region49
    $region48: #{tpu_custom_call.1} parent=1 // pred_region
      %1725 = dma.done [#allocation5], 2048
    $region49: #{tpu_custom_call.1} parent=1 // pred_fallthru
      _
    %1726 = vsyncpa [#allocation4], 1
    %1727 = vsyncpa [#allocation7], 1
    %1728 = vsyncpa [#allocation5], 1

</llo_original>
